<compile_context>
chip_gen: v6e
topology: v6e:2x2x1
jax: 0.10.0
libtpu: 0.0.40
codegen_flags: <defaults>
</compile_context>

<pallas_src>
import functools

import jax
import jax.numpy as jnp
from jax.experimental import pallas as pl
from jax.experimental.pallas import tpu as pltpu


def _round_up(v, m):
    return (v + m - 1) // m * m


# ----------------------------------------------------------------------------
# Kernels
# ----------------------------------------------------------------------------
def _ln_rowwise_kernel(x_ref, g_ref, b_ref, o_ref, *, eps):
    """One logical LayerNorm row per tile row (D spans the full lane width)."""
    x = x_ref[...].astype(jnp.float32)                       # (br, D)
    d = x.shape[-1]
    mean = jnp.mean(x, axis=-1, keepdims=True)
    xc = x - mean
    # torch.Tensor.std() is unbiased -> divide by (D - 1).
    var = jnp.sum(xc * xc, axis=-1, keepdims=True) / jnp.float32(d - 1)
    inv = pl.reciprocal(jnp.sqrt(var) + eps, approx=False)   # EUP, frees VALU
    o_ref[...] = (g_ref[...] * (xc * inv) + b_ref[...]).astype(o_ref.dtype)


def _ln_packed_kernel(x_ref, g_ref, b_ref, seg_ref, o_ref, *, d, eps):
    """`pack` logical rows folded into one 128-lane row (lane-dense, D < 128).

    Per-segment sums are computed via a matmul against a 0/1 segment-indicator
    matrix (MXU), which also broadcasts each segment's statistic across its
    lanes, so everything stays fully lane-dense.
    """
    x = x_ref[...].astype(jnp.float32)                       # (br, W), W=pack*d
    seg = seg_ref[...]                                        # (W, W) f32 0/1
    ssum = jnp.dot(x, seg, preferred_element_type=jnp.float32,
                   precision=jax.lax.Precision.HIGHEST)
    mean = ssum * (1.0 / d)
    xc = x - mean
    ssq = jnp.dot(xc * xc, seg, preferred_element_type=jnp.float32,
                  precision=jax.lax.Precision.HIGHEST)
    var = ssq / jnp.float32(d - 1)                            # unbiased (N-1)
    inv = pl.reciprocal(jnp.sqrt(var) + eps, approx=False)
    o_ref[...] = (g_ref[...] * (xc * inv) + b_ref[...]).astype(o_ref.dtype)


# ----------------------------------------------------------------------------
# Wrapper
# ----------------------------------------------------------------------------
def pallas_layer_norm(x, gamma, beta, eps=1e-6,
                      vmem_budget_bytes=8 * 1024 * 1024):
    """LayerNorm over the last axis. x: (..., D); gamma, beta: (D,)."""
    orig_shape = x.shape
    D = int(orig_shape[-1])
    x2 = x.reshape(-1, D)
    R = x2.shape[0]

    # Lane-dense packing: fold `pack` consecutive rows into one 128-lane row.
    pack = 1
    if D < 128 and 128 % D == 0 and R % (128 // D) == 0:
        pack = 128 // D
    W = pack * D
    Rw = R // pack
    if pack > 1:
        x2 = x2.reshape(Rw, W)

    g2 = jnp.tile(gamma.astype(jnp.float32).reshape(1, D), (1, pack))   # (1, W)
    b2 = jnp.tile(beta.astype(jnp.float32).reshape(1, D), (1, pack))    # (1, W)

    # Row-tile size: double-buffered in+out tiles + ~4 f32 intermediates must
    # fit a conservative VMEM budget (safe on v5e 16 MiB scoped / v7x 64 MiB
    # physical), while guaranteeing >= 8 grid steps so each v7x TensorCore
    # (row axis is "parallel") gets >= 4 pipelined steps.
    itemsize = x.dtype.itemsize
    bytes_per_row = W * (2 * itemsize + 2 * itemsize + 4 * 4)
    br_cap = max(8, (vmem_budget_bytes // bytes_per_row) // 8 * 8)
    br_steps = max(8, _round_up(pl.cdiv(Rw, 8), 8))
    br = int(min(br_cap, br_steps, _round_up(Rw, 8)))
    grid = (pl.cdiv(Rw, br),)     # ragged last block: OOB writes are masked

    if pack > 1:
        lane_seg = jnp.arange(W, dtype=jnp.int32) // D
        seg = (lane_seg[:, None] == lane_seg[None, :]).astype(jnp.float32)
        kernel = functools.partial(_ln_packed_kernel, d=D, eps=eps)
        in_specs = [
            pl.BlockSpec((br, W), lambda i: (i, 0)),   # streamed row tiles
            pl.BlockSpec((1, W), lambda i: (0, 0)),    # gamma: resident
            pl.BlockSpec((1, W), lambda i: (0, 0)),    # beta : resident
            pl.BlockSpec((W, W), lambda i: (0, 0)),    # segment mat: resident
        ]
        args = (x2, g2, b2, seg)
    else:
        kernel = functools.partial(_ln_rowwise_kernel, eps=eps)
        in_specs = [
            pl.BlockSpec((br, W), lambda i: (i, 0)),
            pl.BlockSpec((1, W), lambda i: (0, 0)),
            pl.BlockSpec((1, W), lambda i: (0, 0)),
        ]
        args = (x2, g2, b2)

    out = pl.pallas_call(
        kernel,
        grid=grid,
        in_specs=in_specs,
        out_specs=pl.BlockSpec((br, W), lambda i: (i, 0)),
        out_shape=jax.ShapeDtypeStruct((Rw, W), x.dtype),
        compiler_params=pltpu.CompilerParams(
            dimension_semantics=("parallel",)),        # 2 TCs on v7x split rows
    )(*args)

    return out.reshape(orig_shape)


# ----------------------------------------------------------------------------
# Pure-JAX reference (mirrors the PyTorch module)
# ----------------------------------------------------------------------------
def _layer_norm_ref(x, gamma, beta, eps=1e-6):
    xf = x.astype(jnp.float32)
    mean = jnp.mean(xf, axis=-1, keepdims=True)
    std = jnp.std(xf, axis=-1, keepdims=True, ddof=1)   # unbiased, like torch
    y = gamma * (xf - mean) / (std + eps) + beta
    return y.astype(x.dtype)


# ----------------------------------------------------------------------------
# Example run
# ----------------------------------------------------------------------------
if __name__ == "__main__":
    key = jax.random.PRNGKey(0)
    k1, k2, k3, k4 = jax.random.split(key, 4)

    # Case 1: HyperRoad-like feature_dim = 64 -> lane-dense packed path.
    B, S, D = 4, 64, 64
    x = jax.random.normal(k1, (B, S, D), jnp.float32) * 2.0 + 0.5
    gamma = 1.0 + 0.1 * jax.random.normal(k2, (D,), jnp.float32)
    beta = 0.1 * jax.random.normal(k3, (D,), jnp.float32)

    fn = jax.jit(functools.partial(pallas_layer_norm, eps=1e-6))
    y = jax.block_until_ready(fn(x, gamma, beta))
    ref = _layer_norm_ref(x, gamma, beta, eps=1e-6)
    assert y.shape == x.shape
    err1 = float(jnp.max(jnp.abs(y - ref)))
    assert jnp.allclose(y, ref, rtol=2e-5, atol=2e-5), f"packed path err={err1}"

    # Case 2: ragged row count + D that doesn't divide 128 -> row-wise path
    # (also exercises the no-pad cdiv grid with a masked ragged last block).
    B2, S2, D2 = 2, 37, 96
    x_b = jax.random.normal(k4, (B2, S2, D2), jnp.float32)
    g_b = jnp.ones((D2,), jnp.float32)
    b_b = jnp.zeros((D2,), jnp.float32)
    y_b = jax.block_until_ready(
        jax.jit(functools.partial(pallas_layer_norm, eps=1e-6))(x_b, g_b, b_b))
    ref_b = _layer_norm_ref(x_b, g_b, b_b, eps=1e-6)
    err2 = float(jnp.max(jnp.abs(y_b - ref_b)))
    assert jnp.allclose(y_b, ref_b, rtol=2e-5, atol=2e-5), f"rowwise err={err2}"

    print("KERNEL_OK")
</pallas_src>

<mosaic_0001>
module attributes {stable_mosaic.version = 11 : i64} {
  func.func @_ln_packed_kernel(%arg0: i32, %arg1: memref<16x128xf32, #tpu.memory_space<vmem>>, %arg2: memref<1x128xf32, #tpu.memory_space<vmem>>, %arg3: memref<1x128xf32, #tpu.memory_space<vmem>>, %arg4: memref<128x128xf32, #tpu.memory_space<vmem>>, %arg5: memref<16x128xf32, #tpu.memory_space<vmem>>) attributes {dimension_semantics = [#tpu.dimension_semantics<parallel>], iteration_bounds = array<i64: 8>, scalar_prefetch = 0 : i64, scratch_operands = 0 : i64, tpu.core_type = #tpu.core_type<tc>, window_params = [{transform_indices = @transform_0, window_bounds = array<i64: 16, 128>}, {pipeline_mode = #tpu.pipeline_mode<synchronous>, transform_indices = @transform_1, window_bounds = array<i64: 1, 128>}, {pipeline_mode = #tpu.pipeline_mode<synchronous>, transform_indices = @transform_2, window_bounds = array<i64: 1, 128>}, {pipeline_mode = #tpu.pipeline_mode<synchronous>, transform_indices = @transform_3, window_bounds = array<i64: 128, 128>}, {transform_indices = @transform_4, window_bounds = array<i64: 16, 128>}]} {
    %c0 = arith.constant 0 : index
    %c0_0 = arith.constant 0 : index
    %0 = vector.load %arg1[%c0, %c0_0] : memref<16x128xf32, #tpu.memory_space<vmem>>, vector<16x128xf32>
    %c0_1 = arith.constant 0 : index
    %c0_2 = arith.constant 0 : index
    %1 = vector.load %arg4[%c0_1, %c0_2] : memref<128x128xf32, #tpu.memory_space<vmem>>, vector<128x128xf32>
    %cst = arith.constant dense<0.000000e+00> : vector<16x128xf32>
    %2 = tpu.matmul %0, %1, %cst {dimension_numbers = #tpu.dot_dimension_numbers<[1], [0], [0], [1], [0, 0, 1, 1], [], []>, precision = #tpu.contract_precision<fp32>} : vector<16x128xf32>, vector<128x128xf32>, vector<16x128xf32> -> vector<16x128xf32>
    %cst_3 = arith.constant 1.562500e-02 : f32
    %3 = vector.broadcast %cst_3 : f32 to vector<16x128xf32>
    %4 = arith.mulf %2, %3 : vector<16x128xf32>
    %5 = arith.subf %0, %4 : vector<16x128xf32>
    %6 = arith.mulf %5, %5 : vector<16x128xf32>
    %cst_4 = arith.constant dense<0.000000e+00> : vector<16x128xf32>
    %7 = tpu.matmul %6, %1, %cst_4 {dimension_numbers = #tpu.dot_dimension_numbers<[1], [0], [0], [1], [0, 0, 1, 1], [], []>, precision = #tpu.contract_precision<fp32>} : vector<16x128xf32>, vector<128x128xf32>, vector<16x128xf32> -> vector<16x128xf32>
    %cst_5 = arith.constant 6.300000e+01 : f32
    %8 = vector.broadcast %cst_5 : f32 to vector<16x128xf32>
    %9 = arith.divf %7, %8 : vector<16x128xf32>
    %10 = math.sqrt %9 : vector<16x128xf32>
    %cst_6 = arith.constant 9.99999997E-7 : f32
    %11 = vector.broadcast %cst_6 : f32 to vector<16x128xf32>
    %12 = arith.addf %10, %11 : vector<16x128xf32>
    %13 = tpu.reciprocal %12 : vector<16x128xf32> -> vector<16x128xf32>
    %c0_7 = arith.constant 0 : index
    %c0_8 = arith.constant 0 : index
    %14 = vector.load %arg2[%c0_7, %c0_8] : memref<1x128xf32, #tpu.memory_space<vmem>>, vector<1x128xf32>
    %15 = arith.mulf %5, %13 : vector<16x128xf32>
    %16 = vector.broadcast %14 : vector<1x128xf32> to vector<16x128xf32>
    %17 = arith.mulf %16, %15 : vector<16x128xf32>
    %c0_9 = arith.constant 0 : index
    %c0_10 = arith.constant 0 : index
    %18 = vector.load %arg3[%c0_9, %c0_10] : memref<1x128xf32, #tpu.memory_space<vmem>>, vector<1x128xf32>
    %19 = vector.broadcast %18 : vector<1x128xf32> to vector<16x128xf32>
    %20 = arith.addf %17, %19 : vector<16x128xf32>
    %c0_11 = arith.constant 0 : index
    %c0_12 = arith.constant 0 : index
    %21 = vector.load %arg5[%c0_11, %c0_12] : memref<16x128xf32, #tpu.memory_space<vmem>>, vector<16x128xf32>
    tpu.vector_store %arg5[%c0_11, %c0_12], %20 {strides = array<i32>} : memref<16x128xf32, #tpu.memory_space<vmem>>, vector<16x128xf32>,
    return
  }
  func.func @transform_0(%arg0: i32) -> (i32, i32) {
    %c0_i32 = arith.constant 0 : i32
    %c0_i32_0 = arith.constant 0 : i32
    return %arg0, %c0_i32 : i32, i32
  }
  func.func @transform_1(%arg0: i32) -> (i32, i32) {
    %c0_i32 = arith.constant 0 : i32
    %c0_i32_0 = arith.constant 0 : i32
    %c0_i32_1 = arith.constant 0 : i32
    return %c0_i32, %c0_i32_0 : i32, i32
  }
  func.func @transform_2(%arg0: i32) -> (i32, i32) {
    %c0_i32 = arith.constant 0 : i32
    %c0_i32_0 = arith.constant 0 : i32
    %c0_i32_1 = arith.constant 0 : i32
    return %c0_i32, %c0_i32_0 : i32, i32
  }
  func.func @transform_3(%arg0: i32) -> (i32, i32) {
    %c0_i32 = arith.constant 0 : i32
    %c0_i32_0 = arith.constant 0 : i32
    %c0_i32_1 = arith.constant 0 : i32
    return %c0_i32, %c0_i32_0 : i32, i32
  }
  func.func @transform_4(%arg0: i32) -> (i32, i32) {
    %c0_i32 = arith.constant 0 : i32
    %c0_i32_0 = arith.constant 0 : i32
    return %arg0, %c0_i32 : i32, i32
  }
}

</mosaic_0001>

<llo_original>
// kernel: pallas_layer_norm.1
$region0: #{pallas_layer_norm.1}
  #allocation0 [shape = 'u32[]', space=smem, size = 0x4, offset = 0x4, fixed_abs, tag = 'smem constant byte address 0x4 - core index']
  #allocation1 [shape = 'u32[144,128]{1,0:T(1,128)}', space=vmem, size = 0x12000, scoped, tag = 'internal scratch']
  %s0 = inlined_call_operand.vmem [shape: f32[128,128], index: 0, kind: input, shape index: {}]
  %s1 = inlined_call_operand.vmem [shape: f32[1,128], index: 1, kind: input, shape index: {}]
  %s2 = inlined_call_operand.vmem [shape: f32[1,128], index: 2, kind: input, shape index: {}]
  %s3 = inlined_call_operand.vmem [shape: f32[128,128], index: 3, kind: input, shape index: {}]
  %s4 = inlined_call_operand.vmem [shape: f32[128,128], index: 4, kind: output, shape index: {}]
  %s5 = sld [smem:[#allocation0]]
  $region49: #{pallas_layer_norm.1} parent=0
    _
  %s7 = ssub.s32 1, %s5
  %s8 = scalar_select 0, %s7, %s5
  loop: start=0, step=1, limit=10
  $region2: #{pallas_layer_norm.1} parent=0 // loop_pre_header
    _
  $region3: #{pallas_layer_norm.1} parent=0 // loop_header
    %s10 = sphi 0, %s14
    %p11 = scmp.ge.s32.totalorder %s10, 10
    %s20 = sphi 0, %s22
    %s23 = sphi 0, %s20
    %s24 = sphi 0, %s23
    %s40 = sphi 0, %s24
    %s44 = sphi 0, %s44
    %s46 = sphi 0, %s44
    %s47 = sphi 0, %s46
    %s61 = sphi 0, %s47
    %s65 = sphi 0, %s65
    %s67 = sphi 0, %s65
    %s68 = sphi 0, %s67
    %s82 = sphi 0, %s68
    %s86 = sphi 0, %s86
    %s88 = sphi 0, %s86
    %s89 = sphi 0, %s88
    %s103 = sphi 0, %s89
    %s109 = sphi 0, %s111
    %s112 = sphi 0, %s109
    %s113 = sphi 0, %s112
    %s129 = sphi 0, %s113
  $region4: #{pallas_layer_norm.1} parent=0 // loop_header_branch
    %13 = sbr.rel (%p11) target = $region8
  $region5: #{pallas_layer_norm.1} parent=0 // loop_body
    %s15 = ssub.s32 %s10, 1
    %s16 = ssub.s32 %s10, 2
    %s17 = sadd.s32 %s10, 1
    %s18 = ssub.s32 %s10, %s17
    %p19 = scmp.eq.s32.totalorder %s18, 0
    %s21 = sadd.s32 %s20, 1
    %s22 = scalar_select %p19, %s20, %s21
    %p25 = pneg %p19
    %p26 = scmp.eq.s32.totalorder %s10, 7
    %p27 = por %p25, %p26
    %p28 = scmp.ne.s32.totalorder %s20, %s23
    %p29 = scmp.eq.s32.totalorder %s10, 0
    %p30 = por %p28, %p29
    %p31 = scmp.ne.s32.totalorder %s20, %s23
    %p32 = scmp.eq.s32.totalorder %s15, 7
    %p33 = por %p31, %p32
    %p34 = scmp.ne.s32.totalorder %s23, %s24
    %p35 = scmp.eq.s32.totalorder %s15, 0
    %p36 = por %p34, %p35
    %p37 = scmp.ne.s32.totalorder %s23, %s24
    %p38 = scmp.eq.s32.totalorder %s16, 7
    %p39 = por %p37, %p38
    %p41 = scmp.ne.s32.totalorder %s24, %s40
    %p42 = scmp.eq.s32.totalorder %s16, 0
    %p43 = por %p41, %p42
    %s45 = sadd.s32 %s44, 1
    %p48 = scmp.eq.s32.totalorder %s10, 7
    %p49 = scmp.ne.s32.totalorder %s44, %s46
    %p50 = scmp.eq.s32.totalorder %s10, 0
    %p51 = por %p49, %p50
    %p52 = scmp.ne.s32.totalorder %s44, %s46
    %p53 = scmp.eq.s32.totalorder %s15, 7
    %p54 = por %p52, %p53
    %p55 = scmp.ne.s32.totalorder %s46, %s47
    %p56 = scmp.eq.s32.totalorder %s15, 0
    %p57 = por %p55, %p56
    %p58 = scmp.ne.s32.totalorder %s46, %s47
    %p59 = scmp.eq.s32.totalorder %s16, 7
    %p60 = por %p58, %p59
    %p62 = scmp.ne.s32.totalorder %s47, %s61
    %p63 = scmp.eq.s32.totalorder %s16, 0
    %p64 = por %p62, %p63
    %s66 = sadd.s32 %s65, 1
    %p69 = scmp.eq.s32.totalorder %s10, 7
    %p70 = scmp.ne.s32.totalorder %s65, %s67
    %p71 = scmp.eq.s32.totalorder %s10, 0
    %p72 = por %p70, %p71
    %p73 = scmp.ne.s32.totalorder %s65, %s67
    %p74 = scmp.eq.s32.totalorder %s15, 7
    %p75 = por %p73, %p74
    %p76 = scmp.ne.s32.totalorder %s67, %s68
    %p77 = scmp.eq.s32.totalorder %s15, 0
    %p78 = por %p76, %p77
    %p79 = scmp.ne.s32.totalorder %s67, %s68
    %p80 = scmp.eq.s32.totalorder %s16, 7
    %p81 = por %p79, %p80
    %p83 = scmp.ne.s32.totalorder %s68, %s82
    %p84 = scmp.eq.s32.totalorder %s16, 0
    %p85 = por %p83, %p84
    %s87 = sadd.s32 %s86, 1
    %p90 = scmp.eq.s32.totalorder %s10, 7
    %p91 = scmp.ne.s32.totalorder %s86, %s88
    %p92 = scmp.eq.s32.totalorder %s10, 0
    %p93 = por %p91, %p92
    %p94 = scmp.ne.s32.totalorder %s86, %s88
    %p95 = scmp.eq.s32.totalorder %s15, 7
    %p96 = por %p94, %p95
    %p97 = scmp.ne.s32.totalorder %s88, %s89
    %p98 = scmp.eq.s32.totalorder %s15, 0
    %p99 = por %p97, %p98
    %p100 = scmp.ne.s32.totalorder %s88, %s89
    %p101 = scmp.eq.s32.totalorder %s16, 7
    %p102 = por %p100, %p101
    %p104 = scmp.ne.s32.totalorder %s89, %s103
    %p105 = scmp.eq.s32.totalorder %s16, 0
    %p106 = por %p104, %p105
    %s107 = ssub.s32 %s10, %s17
    %p108 = scmp.eq.s32.totalorder %s107, 0
    %s110 = sadd.s32 %s109, 1
    %s111 = scalar_select %p108, %s109, %s110
    %p114 = pneg %p108
    %p115 = scmp.eq.s32.totalorder %s10, 7
    %p116 = por %p114, %p115
    %p117 = scmp.ne.s32.totalorder %s109, %s112
    %p118 = scmp.eq.s32.totalorder %s10, 0
    %p119 = por %p117, %p118
    %p120 = scmp.ne.s32.totalorder %s109, %s112
    %p121 = scmp.eq.s32.totalorder %s15, 7
    %p122 = por %p120, %p121
    %p123 = scmp.ne.s32.totalorder %s112, %s113
    %p124 = scmp.eq.s32.totalorder %s15, 0
    %p125 = por %p123, %p124
    %p126 = scmp.ne.s32.totalorder %s112, %s113
    %p127 = scmp.eq.s32.totalorder %s16, 7
    %p128 = por %p126, %p127
    %p130 = scmp.ne.s32.totalorder %s113, %s129
    %p131 = scmp.eq.s32.totalorder %s16, 0
    %p132 = por %p130, %p131
    %p133 = scmp.le.s32.totalorder 1, %s10
    %p134 = scmp.lt.s32.totalorder %s10, 9
    %p135 = pnand %p133, %p134
    %p136 = pneg %p135
    // Predicated region
    $region9: #{pallas_layer_norm.1} parent=5 // pred_check
      _
    $region10: #{pallas_layer_norm.1} parent=5 // pred_check_branch
      %138 = sbr.rel (%p135) target = $region12
    $region11: #{pallas_layer_norm.1} parent=5 // pred_region
      %s139 = ssub.s32 %s10, 1
      // Predicated region
      $region13: #{pallas_layer_norm.1} parent=11 // pred_check
        %p140 = pneg %p57
      $region14: #{pallas_layer_norm.1} parent=11 // pred_check_branch
        %142 = sbr.rel (%p140) target = $region16
      $region15: #{pallas_layer_norm.1} parent=11 // pred_region
        _
      $region16: #{pallas_layer_norm.1} parent=11 // pred_fallthru
        _
      // Predicated region
      $region17: #{pallas_layer_norm.1} parent=11 // pred_check
        %p143 = pneg %p78
      $region18: #{pallas_layer_norm.1} parent=11 // pred_check_branch
        %145 = sbr.rel (%p143) target = $region20
      $region19: #{pallas_layer_norm.1} parent=11 // pred_region
        _
      $region20: #{pallas_layer_norm.1} parent=11 // pred_fallthru
        _
      // Predicated region
      $region21: #{pallas_layer_norm.1} parent=11 // pred_check
        %p146 = pneg %p99
      $region22: #{pallas_layer_norm.1} parent=11 // pred_check_branch
        %148 = sbr.rel (%p146) target = $region24
      $region23: #{pallas_layer_norm.1} parent=11 // pred_region
        _
      $region24: #{pallas_layer_norm.1} parent=11 // pred_fallthru
        _
    $region12: #{pallas_layer_norm.1} parent=5 // pred_fallthru
      _
    %p149 = scmp.lt.s32.totalorder %s10, 8
    // Predicated region
    $region25: #{pallas_layer_norm.1} parent=5 // pred_check
      %p150 = pneg %p149
    $region26: #{pallas_layer_norm.1} parent=5 // pred_check_branch
      %152 = sbr.rel (%p150) target = $region28
    $region27: #{pallas_layer_norm.1} parent=5 // pred_region
      // Predicated region
      $region29: #{pallas_layer_norm.1} parent=27 // pred_check
        %p153 = pneg %p30
      $region30: #{pallas_layer_norm.1} parent=27 // pred_check_branch
        %155 = sbr.rel (%p153) target = $region32
      $region31: #{pallas_layer_norm.1} parent=27 // pred_region
        %s156 = smul.u32 2, %s10
        %p157 = scmp.lt.s32.totalorder %s156, 15
        %s158 = scalar_select %p157, %s156, 15
        %s159 = smul.addr %s158, 8
        %s160 = scalar_lea.vmem %s0, %s159
        %s161 = smul.u32 2, %s10
      $region32: #{pallas_layer_norm.1} parent=27 // pred_fallthru
        _
    $region28: #{pallas_layer_norm.1} parent=5 // pred_fallthru
      _
    %p162 = scmp.le.s32.totalorder 1, %s10
    %p163 = scmp.lt.s32.totalorder %s10, 9
    %p164 = pnand %p162, %p163
    %p165 = pneg %p164
    // Predicated region
    $region33: #{pallas_layer_norm.1} parent=5 // pred_check
      _
    $region34: #{pallas_layer_norm.1} parent=5 // pred_check_branch
      %167 = sbr.rel (%p164) target = $region36
    $region35: #{pallas_layer_norm.1} parent=5 // pred_region
      %s168 = ssub.s32 %s10, 1
      %s169 = smul.u32 2, %s15
      %p170 = scmp.lt.s32.totalorder %s169, 15
      %s171 = scalar_select %p170, %s169, 15
      %s172 = smul.addr %s171, 8
      %s173 = scalar_lea.vmem %s0, %s172
      %p174 = pneg %p36
      %p175 = pneg %p33
      %p176 = pneg %p57
      %p177 = pneg %p54
      %p178 = pneg %p78
      %p179 = pneg %p75
      %p180 = pneg %p99
      %p181 = pneg %p96
      %p182 = pneg %p125
      %p183 = pneg %p122
      %s184 = smul.u32 2, %s15
      %p185 = scmp.lt.s32.totalorder %s184, 15
      %s186 = scalar_select %p185, %s184, 15
      %s187 = smul.addr %s186, 8
      %s188 = scalar_lea.vmem %s4, %s187
      %s189 = smul.u32 2, %s15
      %p190 = scmp.lt.s32.totalorder %s189, 15
      %s191 = scalar_select %p190, %s189, 15
      %s192 = smul.addr %s191, 8
      %s193 = scalar_lea.vmem %s0, %s192
      %s194 = smul.u32 2, %s15
      %s195 = smul.u32 2, %s15
      %p196 = scmp.lt.s32.totalorder %s195, 15
      %s197 = scalar_select %p196, %s195, 15
      %s198 = smul.addr %s197, 8
      %s199 = scalar_lea.vmem %s4, %s198
      %s200 = smul.u32 2, %s15
      %v201 = vld [vmem:[%s193] sm:$0xff]
      %v202 = vld [vmem:[%s193 + $0x8] sm:$0xff]
      %v203 = vld [vmem:[%s3] sm:$0xff]
      %v204 = vld [vmem:[%s3 + $0x8] sm:$0xff]
      %v205 = vld [vmem:[%s3 + $0x10] sm:$0xff]
      %v206 = vld [vmem:[%s3 + $0x18] sm:$0xff]
      %v207 = vld [vmem:[%s3 + $0x20] sm:$0xff]
      %v208 = vld [vmem:[%s3 + $0x28] sm:$0xff]
      %v209 = vld [vmem:[%s3 + $0x30] sm:$0xff]
      %v210 = vld [vmem:[%s3 + $0x38] sm:$0xff]
      %v211 = vld [vmem:[%s3 + $0x40] sm:$0xff]
      %v212 = vld [vmem:[%s3 + $0x48] sm:$0xff]
      %v213 = vld [vmem:[%s3 + $0x50] sm:$0xff]
      %v214 = vld [vmem:[%s3 + $0x58] sm:$0xff]
      %v215 = vld [vmem:[%s3 + $0x60] sm:$0xff]
      %v216 = vld [vmem:[%s3 + $0x68] sm:$0xff]
      %v217 = vld [vmem:[%s3 + $0x70] sm:$0xff]
      %v218 = vld [vmem:[%s3 + $0x78] sm:$0xff]
      %219 = vmatprep.subr.mxu0 0.0
      %v220 = vand.u32 %v218, 4294901760
      %221 = vmatpush1.msra.mxu0 %v220
      %222 = vmatprep.subr.mxu0 0.0
      %v223 = vand.u32 %v217, 4294901760
      %224 = vmatpush1.msra.mxu0 %v223
      %225 = vmatprep.subr.mxu0 0.0
      %v226 = vand.u32 %v216, 4294901760
      %227 = vmatpush1.msra.mxu0 %v226
      %228 = vmatprep.subr.mxu0 0.0
      %v229 = vand.u32 %v215, 4294901760
      %230 = vmatpush1.msra.mxu0 %v229
      %231 = vmatprep.subr.mxu0 0.0
      %v232 = vand.u32 %v214, 4294901760
      %233 = vmatpush1.msra.mxu0 %v232
      %234 = vmatprep.subr.mxu0 0.0
      %v235 = vand.u32 %v213, 4294901760
      %236 = vmatpush1.msra.mxu0 %v235
      %237 = vmatprep.subr.mxu0 0.0
      %v238 = vand.u32 %v212, 4294901760
      %239 = vmatpush1.msra.mxu0 %v238
      %240 = vmatprep.subr.mxu0 0.0
      %v241 = vand.u32 %v211, 4294901760
      %242 = vmatpush1.msra.mxu0 %v241
      %243 = vmatprep.subr.mxu0 0.0
      %v244 = vand.u32 %v210, 4294901760
      %245 = vmatpush1.msra.mxu0 %v244
      %246 = vmatprep.subr.mxu0 0.0
      %v247 = vand.u32 %v209, 4294901760
      %248 = vmatpush1.msra.mxu0 %v247
      %249 = vmatprep.subr.mxu0 0.0
      %v250 = vand.u32 %v208, 4294901760
      %251 = vmatpush1.msra.mxu0 %v250
      %252 = vmatprep.subr.mxu0 0.0
      %v253 = vand.u32 %v207, 4294901760
      %254 = vmatpush1.msra.mxu0 %v253
      %255 = vmatprep.subr.mxu0 0.0
      %v256 = vand.u32 %v206, 4294901760
      %257 = vmatpush1.msra.mxu0 %v256
      %258 = vmatprep.subr.mxu0 0.0
      %v259 = vand.u32 %v205, 4294901760
      %260 = vmatpush1.msra.mxu0 %v259
      %261 = vmatprep.subr.mxu0 0.0
      %v262 = vand.u32 %v204, 4294901760
      %263 = vmatpush1.msra.mxu0 %v262
      %264 = vmatprep.subr.mxu0 0.0
      %v265 = vand.u32 %v203, 4294901760
      %266 = vmatpush1.msra.mxu0 %v265
      %267 = vmatprep.subr.mxu0 0.0
      %268 = vmatpush2.msra.mxu0 0.0
      %269 = vmatprep.subr.mxu0 0.0
      %270 = vmatpush2.msra.mxu0 0.0
      %271 = vmatprep.subr.mxu0 0.0
      %272 = vmatpush2.msra.mxu0 0.0
      %273 = vmatprep.subr.mxu0 0.0
      %274 = vmatpush2.msra.mxu0 0.0
      %275 = vmatprep.subr.mxu0 0.0
      %276 = vmatpush2.msra.mxu0 0.0
      %277 = vmatprep.subr.mxu0 0.0
      %278 = vmatpush2.msra.mxu0 0.0
      %279 = vmatprep.subr.mxu0 0.0
      %280 = vmatpush2.msra.mxu0 0.0
      %281 = vmatprep.subr.mxu0 0.0
      %282 = vmatpush2.msra.mxu0 0.0
      %283 = vmatprep.subr.mxu0 0.0
      %284 = vmatpush2.msra.mxu0 0.0
      %285 = vmatprep.subr.mxu0 0.0
      %286 = vmatpush2.msra.mxu0 0.0
      %287 = vmatprep.subr.mxu0 0.0
      %288 = vmatpush2.msra.mxu0 0.0
      %289 = vmatprep.subr.mxu0 0.0
      %290 = vmatpush2.msra.mxu0 0.0
      %291 = vmatprep.subr.mxu0 0.0
      %292 = vmatpush2.msra.mxu0 0.0
      %293 = vmatprep.subr.mxu0 0.0
      %294 = vmatpush2.msra.mxu0 0.0
      %295 = vmatprep.subr.mxu0 0.0
      %296 = vmatpush2.msra.mxu0 0.0
      %297 = vmatprep.subr.mxu0 0.0
      %298 = vmatpush2.msra.mxu0 0.0
      %299 = vmatprep.mubr.f32.mxu0 0.0
      %v300 = vand.u32 %v201, 4294901760
      %v301 = vsub.f32 %v201, %v300
      %v302 = vand.u32 %v301, 4294901760
      %v303 = vsub.f32 %v301, %v302
      %v304 = vand.u32 %v303, 4294901760
      %305 = vmatmul.mubr.f32.gmra.mxu0 %v304
      %v306 = vpop.f32.mrf.mxu0
      %v307 = vadd.f32 0.0, %v306
      %v308 = vpop.f32.mrf.mxu0
      %309 = vmatprep.mubr.f32.mxu0 0.0
      %v310 = vand.u32 %v202, 4294901760
      %v311 = vsub.f32 %v202, %v310
      %v312 = vand.u32 %v311, 4294901760
      %v313 = vsub.f32 %v311, %v312
      %v314 = vand.u32 %v313, 4294901760
      %315 = vmatmul.mubr.f32.gmra.mxu0 %v314
      %v316 = vpop.f32.mrf.mxu0
      %v317 = vadd.f32 0.0, %v316
      %v318 = vpop.f32.mrf.mxu0
      %319 = vdwg.mxu0
      %320 = vmatprep.subr.mxu0 0.0
      %v321 = vand.u32 %v218, 4294901760
      %v322 = vsub.f32 %v218, %v321
      %v323 = vand.u32 %v322, 4294901760
      %v324 = vsub.f32 %v322, %v323
      %v325 = vand.u32 %v324, 4294901760
      %326 = vmatpush1.msra.mxu0 %v325
      %327 = vmatprep.subr.mxu0 0.0
      %v328 = vand.u32 %v217, 4294901760
      %v329 = vsub.f32 %v217, %v328
      %v330 = vand.u32 %v329, 4294901760
      %v331 = vsub.f32 %v329, %v330
      %v332 = vand.u32 %v331, 4294901760
      %333 = vmatpush1.msra.mxu0 %v332
      %334 = vmatprep.subr.mxu0 0.0
      %v335 = vand.u32 %v216, 4294901760
      %v336 = vsub.f32 %v216, %v335
      %v337 = vand.u32 %v336, 4294901760
      %v338 = vsub.f32 %v336, %v337
      %v339 = vand.u32 %v338, 4294901760
      %340 = vmatpush1.msra.mxu0 %v339
      %341 = vmatprep.subr.mxu0 0.0
      %v342 = vand.u32 %v215, 4294901760
      %v343 = vsub.f32 %v215, %v342
      %v344 = vand.u32 %v343, 4294901760
      %v345 = vsub.f32 %v343, %v344
      %v346 = vand.u32 %v345, 4294901760
      %347 = vmatpush1.msra.mxu0 %v346
      %348 = vmatprep.subr.mxu0 0.0
      %v349 = vand.u32 %v214, 4294901760
      %v350 = vsub.f32 %v214, %v349
      %v351 = vand.u32 %v350, 4294901760
      %v352 = vsub.f32 %v350, %v351
      %v353 = vand.u32 %v352, 4294901760
      %354 = vmatpush1.msra.mxu0 %v353
      %355 = vmatprep.subr.mxu0 0.0
      %v356 = vand.u32 %v213, 4294901760
      %v357 = vsub.f32 %v213, %v356
      %v358 = vand.u32 %v357, 4294901760
      %v359 = vsub.f32 %v357, %v358
      %v360 = vand.u32 %v359, 4294901760
      %361 = vmatpush1.msra.mxu0 %v360
      %362 = vmatprep.subr.mxu0 0.0
      %v363 = vand.u32 %v212, 4294901760
      %v364 = vsub.f32 %v212, %v363
      %v365 = vand.u32 %v364, 4294901760
      %v366 = vsub.f32 %v364, %v365
      %v367 = vand.u32 %v366, 4294901760
      %368 = vmatpush1.msra.mxu0 %v367
      %369 = vmatprep.subr.mxu0 0.0
      %v370 = vand.u32 %v211, 4294901760
      %v371 = vsub.f32 %v211, %v370
      %v372 = vand.u32 %v371, 4294901760
      %v373 = vsub.f32 %v371, %v372
      %v374 = vand.u32 %v373, 4294901760
      %375 = vmatpush1.msra.mxu0 %v374
      %376 = vmatprep.subr.mxu0 0.0
      %v377 = vand.u32 %v210, 4294901760
      %v378 = vsub.f32 %v210, %v377
      %v379 = vand.u32 %v378, 4294901760
      %v380 = vsub.f32 %v378, %v379
      %v381 = vand.u32 %v380, 4294901760
      %382 = vmatpush1.msra.mxu0 %v381
      %383 = vmatprep.subr.mxu0 0.0
      %v384 = vand.u32 %v209, 4294901760
      %v385 = vsub.f32 %v209, %v384
      %v386 = vand.u32 %v385, 4294901760
      %v387 = vsub.f32 %v385, %v386
      %v388 = vand.u32 %v387, 4294901760
      %389 = vmatpush1.msra.mxu0 %v388
      %390 = vmatprep.subr.mxu0 0.0
      %v391 = vand.u32 %v208, 4294901760
      %v392 = vsub.f32 %v208, %v391
      %v393 = vand.u32 %v392, 4294901760
      %v394 = vsub.f32 %v392, %v393
      %v395 = vand.u32 %v394, 4294901760
      %396 = vmatpush1.msra.mxu0 %v395
      %397 = vmatprep.subr.mxu0 0.0
      %v398 = vand.u32 %v207, 4294901760
      %v399 = vsub.f32 %v207, %v398
      %v400 = vand.u32 %v399, 4294901760
      %v401 = vsub.f32 %v399, %v400
      %v402 = vand.u32 %v401, 4294901760
      %403 = vmatpush1.msra.mxu0 %v402
      %404 = vmatprep.subr.mxu0 0.0
      %v405 = vand.u32 %v206, 4294901760
      %v406 = vsub.f32 %v206, %v405
      %v407 = vand.u32 %v406, 4294901760
      %v408 = vsub.f32 %v406, %v407
      %v409 = vand.u32 %v408, 4294901760
      %410 = vmatpush1.msra.mxu0 %v409
      %411 = vmatprep.subr.mxu0 0.0
      %v412 = vand.u32 %v205, 4294901760
      %v413 = vsub.f32 %v205, %v412
      %v414 = vand.u32 %v413, 4294901760
      %v415 = vsub.f32 %v413, %v414
      %v416 = vand.u32 %v415, 4294901760
      %417 = vmatpush1.msra.mxu0 %v416
      %418 = vmatprep.subr.mxu0 0.0
      %v419 = vand.u32 %v204, 4294901760
      %v420 = vsub.f32 %v204, %v419
      %v421 = vand.u32 %v420, 4294901760
      %v422 = vsub.f32 %v420, %v421
      %v423 = vand.u32 %v422, 4294901760
      %424 = vmatpush1.msra.mxu0 %v423
      %425 = vmatprep.subr.mxu0 0.0
      %v426 = vand.u32 %v203, 4294901760
      %v427 = vsub.f32 %v203, %v426
      %v428 = vand.u32 %v427, 4294901760
      %v429 = vsub.f32 %v427, %v428
      %v430 = vand.u32 %v429, 4294901760
      %431 = vmatpush1.msra.mxu0 %v430
      %432 = vmatprep.subr.mxu0 0.0
      %433 = vmatpush2.msra.mxu0 0.0
      %434 = vmatprep.subr.mxu0 0.0
      %435 = vmatpush2.msra.mxu0 0.0
      %436 = vmatprep.subr.mxu0 0.0
      %437 = vmatpush2.msra.mxu0 0.0
      %438 = vmatprep.subr.mxu0 0.0
      %439 = vmatpush2.msra.mxu0 0.0
      %440 = vmatprep.subr.mxu0 0.0
      %441 = vmatpush2.msra.mxu0 0.0
      %442 = vmatprep.subr.mxu0 0.0
      %443 = vmatpush2.msra.mxu0 0.0
      %444 = vmatprep.subr.mxu0 0.0
      %445 = vmatpush2.msra.mxu0 0.0
      %446 = vmatprep.subr.mxu0 0.0
      %447 = vmatpush2.msra.mxu0 0.0
      %448 = vmatprep.subr.mxu0 0.0
      %449 = vmatpush2.msra.mxu0 0.0
      %450 = vmatprep.subr.mxu0 0.0
      %451 = vmatpush2.msra.mxu0 0.0
      %452 = vmatprep.subr.mxu0 0.0
      %453 = vmatpush2.msra.mxu0 0.0
      %454 = vmatprep.subr.mxu0 0.0
      %455 = vmatpush2.msra.mxu0 0.0
      %456 = vmatprep.subr.mxu0 0.0
      %457 = vmatpush2.msra.mxu0 0.0
      %458 = vmatprep.subr.mxu0 0.0
      %459 = vmatpush2.msra.mxu0 0.0
      %460 = vmatprep.subr.mxu0 0.0
      %461 = vmatpush2.msra.mxu0 0.0
      %462 = vmatprep.subr.mxu0 0.0
      %463 = vmatpush2.msra.mxu0 0.0
      %464 = vmatprep.mubr.f32.mxu0 0.0
      %v465 = vand.u32 %v201, 4294901760
      %466 = vmatmul.mubr.f32.gmra.mxu0 %v465
      %v467 = vpop.f32.mrf.mxu0
      %v468 = vadd.f32 %v307, %v467
      %v469 = vpop.f32.mrf.mxu0
      %470 = vmatprep.mubr.f32.mxu0 0.0
      %v471 = vand.u32 %v202, 4294901760
      %472 = vmatmul.mubr.f32.gmra.mxu0 %v471
      %v473 = vpop.f32.mrf.mxu0
      %v474 = vadd.f32 %v317, %v473
      %v475 = vpop.f32.mrf.mxu0
      %476 = vdwg.mxu0
      %477 = vmatprep.subr.mxu0 0.0
      %v478 = vand.u32 %v218, 4294901760
      %v479 = vsub.f32 %v218, %v478
      %480 = vmatpush1.msra.mxu0 %v479
      %481 = vmatprep.subr.mxu0 0.0
      %v482 = vand.u32 %v217, 4294901760
      %v483 = vsub.f32 %v217, %v482
      %484 = vmatpush1.msra.mxu0 %v483
      %485 = vmatprep.subr.mxu0 0.0
      %v486 = vand.u32 %v216, 4294901760
      %v487 = vsub.f32 %v216, %v486
      %488 = vmatpush1.msra.mxu0 %v487
      %489 = vmatprep.subr.mxu0 0.0
      %v490 = vand.u32 %v215, 4294901760
      %v491 = vsub.f32 %v215, %v490
      %492 = vmatpush1.msra.mxu0 %v491
      %493 = vmatprep.subr.mxu0 0.0
      %v494 = vand.u32 %v214, 4294901760
      %v495 = vsub.f32 %v214, %v494
      %496 = vmatpush1.msra.mxu0 %v495
      %497 = vmatprep.subr.mxu0 0.0
      %v498 = vand.u32 %v213, 4294901760
      %v499 = vsub.f32 %v213, %v498
      %500 = vmatpush1.msra.mxu0 %v499
      %501 = vmatprep.subr.mxu0 0.0
      %v502 = vand.u32 %v212, 4294901760
      %v503 = vsub.f32 %v212, %v502
      %504 = vmatpush1.msra.mxu0 %v503
      %505 = vmatprep.subr.mxu0 0.0
      %v506 = vand.u32 %v211, 4294901760
      %v507 = vsub.f32 %v211, %v506
      %508 = vmatpush1.msra.mxu0 %v507
      %509 = vmatprep.subr.mxu0 0.0
      %v510 = vand.u32 %v210, 4294901760
      %v511 = vsub.f32 %v210, %v510
      %512 = vmatpush1.msra.mxu0 %v511
      %513 = vmatprep.subr.mxu0 0.0
      %v514 = vand.u32 %v209, 4294901760
      %v515 = vsub.f32 %v209, %v514
      %516 = vmatpush1.msra.mxu0 %v515
      %517 = vmatprep.subr.mxu0 0.0
      %v518 = vand.u32 %v208, 4294901760
      %v519 = vsub.f32 %v208, %v518
      %520 = vmatpush1.msra.mxu0 %v519
      %521 = vmatprep.subr.mxu0 0.0
      %v522 = vand.u32 %v207, 4294901760
      %v523 = vsub.f32 %v207, %v522
      %524 = vmatpush1.msra.mxu0 %v523
      %525 = vmatprep.subr.mxu0 0.0
      %v526 = vand.u32 %v206, 4294901760
      %v527 = vsub.f32 %v206, %v526
      %528 = vmatpush1.msra.mxu0 %v527
      %529 = vmatprep.subr.mxu0 0.0
      %v530 = vand.u32 %v205, 4294901760
      %v531 = vsub.f32 %v205, %v530
      %532 = vmatpush1.msra.mxu0 %v531
      %533 = vmatprep.subr.mxu0 0.0
      %v534 = vand.u32 %v204, 4294901760
      %v535 = vsub.f32 %v204, %v534
      %536 = vmatpush1.msra.mxu0 %v535
      %537 = vmatprep.subr.mxu0 0.0
      %v538 = vand.u32 %v203, 4294901760
      %v539 = vsub.f32 %v203, %v538
      %540 = vmatpush1.msra.mxu0 %v539
      %541 = vmatprep.subr.mxu0 0.0
      %542 = vmatpush2.msra.mxu0 0.0
      %543 = vmatprep.subr.mxu0 0.0
      %544 = vmatpush2.msra.mxu0 0.0
      %545 = vmatprep.subr.mxu0 0.0
      %546 = vmatpush2.msra.mxu0 0.0
      %547 = vmatprep.subr.mxu0 0.0
      %548 = vmatpush2.msra.mxu0 0.0
      %549 = vmatprep.subr.mxu0 0.0
      %550 = vmatpush2.msra.mxu0 0.0
      %551 = vmatprep.subr.mxu0 0.0
      %552 = vmatpush2.msra.mxu0 0.0
      %553 = vmatprep.subr.mxu0 0.0
      %554 = vmatpush2.msra.mxu0 0.0
      %555 = vmatprep.subr.mxu0 0.0
      %556 = vmatpush2.msra.mxu0 0.0
      %557 = vmatprep.subr.mxu0 0.0
      %558 = vmatpush2.msra.mxu0 0.0
      %559 = vmatprep.subr.mxu0 0.0
      %560 = vmatpush2.msra.mxu0 0.0
      %561 = vmatprep.subr.mxu0 0.0
      %562 = vmatpush2.msra.mxu0 0.0
      %563 = vmatprep.subr.mxu0 0.0
      %564 = vmatpush2.msra.mxu0 0.0
      %565 = vmatprep.subr.mxu0 0.0
      %566 = vmatpush2.msra.mxu0 0.0
      %567 = vmatprep.subr.mxu0 0.0
      %568 = vmatpush2.msra.mxu0 0.0
      %569 = vmatprep.subr.mxu0 0.0
      %570 = vmatpush2.msra.mxu0 0.0
      %571 = vmatprep.subr.mxu0 0.0
      %572 = vmatpush2.msra.mxu0 0.0
      %573 = vmatprep.mubr.f32.mxu0 0.0
      %v574 = vand.u32 %v201, 4294901760
      %v575 = vsub.f32 %v201, %v574
      %576 = vmatmul.mubr.f32.gmra.mxu0 %v575
      %v577 = vpop.f32.mrf.mxu0
      %v578 = vadd.f32 %v468, %v577
      %v579 = vpop.f32.mrf.mxu0
      %580 = vmatprep.mubr.f32.mxu0 0.0
      %v581 = vand.u32 %v202, 4294901760
      %v582 = vsub.f32 %v202, %v581
      %583 = vmatmul.mubr.f32.gmra.mxu0 %v582
      %v584 = vpop.f32.mrf.mxu0
      %v585 = vadd.f32 %v474, %v584
      %v586 = vpop.f32.mrf.mxu0
      %587 = vdwg.mxu0
      %588 = vmatprep.subr.mxu0 0.0
      %v589 = vand.u32 %v218, 4294901760
      %590 = vmatpush1.msra.mxu0 %v589
      %591 = vmatprep.subr.mxu0 0.0
      %v592 = vand.u32 %v217, 4294901760
      %593 = vmatpush1.msra.mxu0 %v592
      %594 = vmatprep.subr.mxu0 0.0
      %v595 = vand.u32 %v216, 4294901760
      %596 = vmatpush1.msra.mxu0 %v595
      %597 = vmatprep.subr.mxu0 0.0
      %v598 = vand.u32 %v215, 4294901760
      %599 = vmatpush1.msra.mxu0 %v598
      %600 = vmatprep.subr.mxu0 0.0
      %v601 = vand.u32 %v214, 4294901760
      %602 = vmatpush1.msra.mxu0 %v601
      %603 = vmatprep.subr.mxu0 0.0
      %v604 = vand.u32 %v213, 4294901760
      %605 = vmatpush1.msra.mxu0 %v604
      %606 = vmatprep.subr.mxu0 0.0
      %v607 = vand.u32 %v212, 4294901760
      %608 = vmatpush1.msra.mxu0 %v607
      %609 = vmatprep.subr.mxu0 0.0
      %v610 = vand.u32 %v211, 4294901760
      %611 = vmatpush1.msra.mxu0 %v610
      %612 = vmatprep.subr.mxu0 0.0
      %v613 = vand.u32 %v210, 4294901760
      %614 = vmatpush1.msra.mxu0 %v613
      %615 = vmatprep.subr.mxu0 0.0
      %v616 = vand.u32 %v209, 4294901760
      %617 = vmatpush1.msra.mxu0 %v616
      %618 = vmatprep.subr.mxu0 0.0
      %v619 = vand.u32 %v208, 4294901760
      %620 = vmatpush1.msra.mxu0 %v619
      %621 = vmatprep.subr.mxu0 0.0
      %v622 = vand.u32 %v207, 4294901760
      %623 = vmatpush1.msra.mxu0 %v622
      %624 = vmatprep.subr.mxu0 0.0
      %v625 = vand.u32 %v206, 4294901760
      %626 = vmatpush1.msra.mxu0 %v625
      %627 = vmatprep.subr.mxu0 0.0
      %v628 = vand.u32 %v205, 4294901760
      %629 = vmatpush1.msra.mxu0 %v628
      %630 = vmatprep.subr.mxu0 0.0
      %v631 = vand.u32 %v204, 4294901760
      %632 = vmatpush1.msra.mxu0 %v631
      %633 = vmatprep.subr.mxu0 0.0
      %v634 = vand.u32 %v203, 4294901760
      %635 = vmatpush1.msra.mxu0 %v634
      %636 = vmatprep.subr.mxu0 0.0
      %637 = vmatpush2.msra.mxu0 0.0
      %638 = vmatprep.subr.mxu0 0.0
      %639 = vmatpush2.msra.mxu0 0.0
      %640 = vmatprep.subr.mxu0 0.0
      %641 = vmatpush2.msra.mxu0 0.0
      %642 = vmatprep.subr.mxu0 0.0
      %643 = vmatpush2.msra.mxu0 0.0
      %644 = vmatprep.subr.mxu0 0.0
      %645 = vmatpush2.msra.mxu0 0.0
      %646 = vmatprep.subr.mxu0 0.0
      %647 = vmatpush2.msra.mxu0 0.0
      %648 = vmatprep.subr.mxu0 0.0
      %649 = vmatpush2.msra.mxu0 0.0
      %650 = vmatprep.subr.mxu0 0.0
      %651 = vmatpush2.msra.mxu0 0.0
      %652 = vmatprep.subr.mxu0 0.0
      %653 = vmatpush2.msra.mxu0 0.0
      %654 = vmatprep.subr.mxu0 0.0
      %655 = vmatpush2.msra.mxu0 0.0
      %656 = vmatprep.subr.mxu0 0.0
      %657 = vmatpush2.msra.mxu0 0.0
      %658 = vmatprep.subr.mxu0 0.0
      %659 = vmatpush2.msra.mxu0 0.0
      %660 = vmatprep.subr.mxu0 0.0
      %661 = vmatpush2.msra.mxu0 0.0
      %662 = vmatprep.subr.mxu0 0.0
      %663 = vmatpush2.msra.mxu0 0.0
      %664 = vmatprep.subr.mxu0 0.0
      %665 = vmatpush2.msra.mxu0 0.0
      %666 = vmatprep.subr.mxu0 0.0
      %667 = vmatpush2.msra.mxu0 0.0
      %668 = vmatprep.mubr.f32.mxu0 0.0
      %v669 = vand.u32 %v201, 4294901760
      %v670 = vsub.f32 %v201, %v669
      %v671 = vand.u32 %v670, 4294901760
      %672 = vmatmul.mubr.f32.gmra.mxu0 %v671
      %v673 = vpop.f32.mrf.mxu0
      %v674 = vadd.f32 %v578, %v673
      %v675 = vpop.f32.mrf.mxu0
      %676 = vmatprep.mubr.f32.mxu0 0.0
      %v677 = vand.u32 %v202, 4294901760
      %v678 = vsub.f32 %v202, %v677
      %v679 = vand.u32 %v678, 4294901760
      %680 = vmatmul.mubr.f32.gmra.mxu0 %v679
      %v681 = vpop.f32.mrf.mxu0
      %v682 = vadd.f32 %v585, %v681
      %v683 = vpop.f32.mrf.mxu0
      %684 = vdwg.mxu0
      %685 = vmatprep.subr.mxu0 0.0
      %v686 = vand.u32 %v218, 4294901760
      %v687 = vsub.f32 %v218, %v686
      %v688 = vand.u32 %v687, 4294901760
      %689 = vmatpush1.msra.mxu0 %v688
      %690 = vmatprep.subr.mxu0 0.0
      %v691 = vand.u32 %v217, 4294901760
      %v692 = vsub.f32 %v217, %v691
      %v693 = vand.u32 %v692, 4294901760
      %694 = vmatpush1.msra.mxu0 %v693
      %695 = vmatprep.subr.mxu0 0.0
      %v696 = vand.u32 %v216, 4294901760
      %v697 = vsub.f32 %v216, %v696
      %v698 = vand.u32 %v697, 4294901760
      %699 = vmatpush1.msra.mxu0 %v698
      %700 = vmatprep.subr.mxu0 0.0
      %v701 = vand.u32 %v215, 4294901760
      %v702 = vsub.f32 %v215, %v701
      %v703 = vand.u32 %v702, 4294901760
      %704 = vmatpush1.msra.mxu0 %v703
      %705 = vmatprep.subr.mxu0 0.0
      %v706 = vand.u32 %v214, 4294901760
      %v707 = vsub.f32 %v214, %v706
      %v708 = vand.u32 %v707, 4294901760
      %709 = vmatpush1.msra.mxu0 %v708
      %710 = vmatprep.subr.mxu0 0.0
      %v711 = vand.u32 %v213, 4294901760
      %v712 = vsub.f32 %v213, %v711
      %v713 = vand.u32 %v712, 4294901760
      %714 = vmatpush1.msra.mxu0 %v713
      %715 = vmatprep.subr.mxu0 0.0
      %v716 = vand.u32 %v212, 4294901760
      %v717 = vsub.f32 %v212, %v716
      %v718 = vand.u32 %v717, 4294901760
      %719 = vmatpush1.msra.mxu0 %v718
      %720 = vmatprep.subr.mxu0 0.0
      %v721 = vand.u32 %v211, 4294901760
      %v722 = vsub.f32 %v211, %v721
      %v723 = vand.u32 %v722, 4294901760
      %724 = vmatpush1.msra.mxu0 %v723
      %725 = vmatprep.subr.mxu0 0.0
      %v726 = vand.u32 %v210, 4294901760
      %v727 = vsub.f32 %v210, %v726
      %v728 = vand.u32 %v727, 4294901760
      %729 = vmatpush1.msra.mxu0 %v728
      %730 = vmatprep.subr.mxu0 0.0
      %v731 = vand.u32 %v209, 4294901760
      %v732 = vsub.f32 %v209, %v731
      %v733 = vand.u32 %v732, 4294901760
      %734 = vmatpush1.msra.mxu0 %v733
      %735 = vmatprep.subr.mxu0 0.0
      %v736 = vand.u32 %v208, 4294901760
      %v737 = vsub.f32 %v208, %v736
      %v738 = vand.u32 %v737, 4294901760
      %739 = vmatpush1.msra.mxu0 %v738
      %740 = vmatprep.subr.mxu0 0.0
      %v741 = vand.u32 %v207, 4294901760
      %v742 = vsub.f32 %v207, %v741
      %v743 = vand.u32 %v742, 4294901760
      %744 = vmatpush1.msra.mxu0 %v743
      %745 = vmatprep.subr.mxu0 0.0
      %v746 = vand.u32 %v206, 4294901760
      %v747 = vsub.f32 %v206, %v746
      %v748 = vand.u32 %v747, 4294901760
      %749 = vmatpush1.msra.mxu0 %v748
      %750 = vmatprep.subr.mxu0 0.0
      %v751 = vand.u32 %v205, 4294901760
      %v752 = vsub.f32 %v205, %v751
      %v753 = vand.u32 %v752, 4294901760
      %754 = vmatpush1.msra.mxu0 %v753
      %755 = vmatprep.subr.mxu0 0.0
      %v756 = vand.u32 %v204, 4294901760
      %v757 = vsub.f32 %v204, %v756
      %v758 = vand.u32 %v757, 4294901760
      %759 = vmatpush1.msra.mxu0 %v758
      %760 = vmatprep.subr.mxu0 0.0
      %v761 = vand.u32 %v203, 4294901760
      %v762 = vsub.f32 %v203, %v761
      %v763 = vand.u32 %v762, 4294901760
      %764 = vmatpush1.msra.mxu0 %v763
      %765 = vmatprep.subr.mxu0 0.0
      %766 = vmatpush2.msra.mxu0 0.0
      %767 = vmatprep.subr.mxu0 0.0
      %768 = vmatpush2.msra.mxu0 0.0
      %769 = vmatprep.subr.mxu0 0.0
      %770 = vmatpush2.msra.mxu0 0.0
      %771 = vmatprep.subr.mxu0 0.0
      %772 = vmatpush2.msra.mxu0 0.0
      %773 = vmatprep.subr.mxu0 0.0
      %774 = vmatpush2.msra.mxu0 0.0
      %775 = vmatprep.subr.mxu0 0.0
      %776 = vmatpush2.msra.mxu0 0.0
      %777 = vmatprep.subr.mxu0 0.0
      %778 = vmatpush2.msra.mxu0 0.0
      %779 = vmatprep.subr.mxu0 0.0
      %780 = vmatpush2.msra.mxu0 0.0
      %781 = vmatprep.subr.mxu0 0.0
      %782 = vmatpush2.msra.mxu0 0.0
      %783 = vmatprep.subr.mxu0 0.0
      %784 = vmatpush2.msra.mxu0 0.0
      %785 = vmatprep.subr.mxu0 0.0
      %786 = vmatpush2.msra.mxu0 0.0
      %787 = vmatprep.subr.mxu0 0.0
      %788 = vmatpush2.msra.mxu0 0.0
      %789 = vmatprep.subr.mxu0 0.0
      %790 = vmatpush2.msra.mxu0 0.0
      %791 = vmatprep.subr.mxu0 0.0
      %792 = vmatpush2.msra.mxu0 0.0
      %793 = vmatprep.subr.mxu0 0.0
      %794 = vmatpush2.msra.mxu0 0.0
      %795 = vmatprep.subr.mxu0 0.0
      %796 = vmatpush2.msra.mxu0 0.0
      %797 = vmatprep.mubr.f32.mxu0 0.0
      %v798 = vand.u32 %v201, 4294901760
      %799 = vmatmul.mubr.f32.gmra.mxu0 %v798
      %v800 = vpop.f32.mrf.mxu0
      %v801 = vadd.f32 %v674, %v800
      %v802 = vpop.f32.mrf.mxu0
      %803 = vmatprep.mubr.f32.mxu0 0.0
      %v804 = vand.u32 %v202, 4294901760
      %805 = vmatmul.mubr.f32.gmra.mxu0 %v804
      %v806 = vpop.f32.mrf.mxu0
      %v807 = vadd.f32 %v682, %v806
      %v808 = vpop.f32.mrf.mxu0
      %809 = vdwg.mxu0
      %810 = vmatprep.subr.mxu0 0.0
      %v811 = vand.u32 %v218, 4294901760
      %812 = vmatpush1.msra.mxu0 %v811
      %813 = vmatprep.subr.mxu0 0.0
      %v814 = vand.u32 %v217, 4294901760
      %815 = vmatpush1.msra.mxu0 %v814
      %816 = vmatprep.subr.mxu0 0.0
      %v817 = vand.u32 %v216, 4294901760
      %818 = vmatpush1.msra.mxu0 %v817
      %819 = vmatprep.subr.mxu0 0.0
      %v820 = vand.u32 %v215, 4294901760
      %821 = vmatpush1.msra.mxu0 %v820
      %822 = vmatprep.subr.mxu0 0.0
      %v823 = vand.u32 %v214, 4294901760
      %824 = vmatpush1.msra.mxu0 %v823
      %825 = vmatprep.subr.mxu0 0.0
      %v826 = vand.u32 %v213, 4294901760
      %827 = vmatpush1.msra.mxu0 %v826
      %828 = vmatprep.subr.mxu0 0.0
      %v829 = vand.u32 %v212, 4294901760
      %830 = vmatpush1.msra.mxu0 %v829
      %831 = vmatprep.subr.mxu0 0.0
      %v832 = vand.u32 %v211, 4294901760
      %833 = vmatpush1.msra.mxu0 %v832
      %834 = vmatprep.subr.mxu0 0.0
      %v835 = vand.u32 %v210, 4294901760
      %836 = vmatpush1.msra.mxu0 %v835
      %837 = vmatprep.subr.mxu0 0.0
      %v838 = vand.u32 %v209, 4294901760
      %839 = vmatpush1.msra.mxu0 %v838
      %840 = vmatprep.subr.mxu0 0.0
      %v841 = vand.u32 %v208, 4294901760
      %842 = vmatpush1.msra.mxu0 %v841
      %843 = vmatprep.subr.mxu0 0.0
      %v844 = vand.u32 %v207, 4294901760
      %845 = vmatpush1.msra.mxu0 %v844
      %846 = vmatprep.subr.mxu0 0.0
      %v847 = vand.u32 %v206, 4294901760
      %848 = vmatpush1.msra.mxu0 %v847
      %849 = vmatprep.subr.mxu0 0.0
      %v850 = vand.u32 %v205, 4294901760
      %851 = vmatpush1.msra.mxu0 %v850
      %852 = vmatprep.subr.mxu0 0.0
      %v853 = vand.u32 %v204, 4294901760
      %854 = vmatpush1.msra.mxu0 %v853
      %855 = vmatprep.subr.mxu0 0.0
      %v856 = vand.u32 %v203, 4294901760
      %857 = vmatpush1.msra.mxu0 %v856
      %858 = vmatprep.subr.mxu0 0.0
      %859 = vmatpush2.msra.mxu0 0.0
      %860 = vmatprep.subr.mxu0 0.0
      %861 = vmatpush2.msra.mxu0 0.0
      %862 = vmatprep.subr.mxu0 0.0
      %863 = vmatpush2.msra.mxu0 0.0
      %864 = vmatprep.subr.mxu0 0.0
      %865 = vmatpush2.msra.mxu0 0.0
      %866 = vmatprep.subr.mxu0 0.0
      %867 = vmatpush2.msra.mxu0 0.0
      %868 = vmatprep.subr.mxu0 0.0
      %869 = vmatpush2.msra.mxu0 0.0
      %870 = vmatprep.subr.mxu0 0.0
      %871 = vmatpush2.msra.mxu0 0.0
      %872 = vmatprep.subr.mxu0 0.0
      %873 = vmatpush2.msra.mxu0 0.0
      %874 = vmatprep.subr.mxu0 0.0
      %875 = vmatpush2.msra.mxu0 0.0
      %876 = vmatprep.subr.mxu0 0.0
      %877 = vmatpush2.msra.mxu0 0.0
      %878 = vmatprep.subr.mxu0 0.0
      %879 = vmatpush2.msra.mxu0 0.0
      %880 = vmatprep.subr.mxu0 0.0
      %881 = vmatpush2.msra.mxu0 0.0
      %882 = vmatprep.subr.mxu0 0.0
      %883 = vmatpush2.msra.mxu0 0.0
      %884 = vmatprep.subr.mxu0 0.0
      %885 = vmatpush2.msra.mxu0 0.0
      %886 = vmatprep.subr.mxu0 0.0
      %887 = vmatpush2.msra.mxu0 0.0
      %888 = vmatprep.subr.mxu0 0.0
      %889 = vmatpush2.msra.mxu0 0.0
      %890 = vmatprep.mubr.f32.mxu0 0.0
      %v891 = vand.u32 %v201, 4294901760
      %892 = vmatmul.mubr.f32.gmra.mxu0 %v891
      %v893 = vpop.f32.mrf.mxu0
      %v894 = vadd.f32 %v801, %v893
      %v895 = vpop.f32.mrf.mxu0
      %896 = vmatprep.mubr.f32.mxu0 0.0
      %v897 = vand.u32 %v202, 4294901760
      %898 = vmatmul.mubr.f32.gmra.mxu0 %v897
      %v899 = vpop.f32.mrf.mxu0
      %v900 = vadd.f32 %v807, %v899
      %v901 = vpop.f32.mrf.mxu0
      %902 = vdwg.mxu0
      %v903 = vmul.f32 %v894, 0.015625
      %v904 = vmul.f32 %v900, 0.015625
      %v905 = vsub.f32 %v201, %v903
      %v906 = vsub.f32 %v202, %v904
      %v907 = vmul.f32 %v905, %v905
      %v908 = vmul.f32 %v906, %v906
      %909 = vmatprep.subr.mxu0 0.0
      %v910 = vand.u32 %v218, 4294901760
      %911 = vmatpush1.msra.mxu0 %v910
      %912 = vmatprep.subr.mxu0 0.0
      %v913 = vand.u32 %v217, 4294901760
      %914 = vmatpush1.msra.mxu0 %v913
      %915 = vmatprep.subr.mxu0 0.0
      %v916 = vand.u32 %v216, 4294901760
      %917 = vmatpush1.msra.mxu0 %v916
      %918 = vmatprep.subr.mxu0 0.0
      %v919 = vand.u32 %v215, 4294901760
      %920 = vmatpush1.msra.mxu0 %v919
      %921 = vmatprep.subr.mxu0 0.0
      %v922 = vand.u32 %v214, 4294901760
      %923 = vmatpush1.msra.mxu0 %v922
      %924 = vmatprep.subr.mxu0 0.0
      %v925 = vand.u32 %v213, 4294901760
      %926 = vmatpush1.msra.mxu0 %v925
      %927 = vmatprep.subr.mxu0 0.0
      %v928 = vand.u32 %v212, 4294901760
      %929 = vmatpush1.msra.mxu0 %v928
      %930 = vmatprep.subr.mxu0 0.0
      %v931 = vand.u32 %v211, 4294901760
      %932 = vmatpush1.msra.mxu0 %v931
      %933 = vmatprep.subr.mxu0 0.0
      %v934 = vand.u32 %v210, 4294901760
      %935 = vmatpush1.msra.mxu0 %v934
      %936 = vmatprep.subr.mxu0 0.0
      %v937 = vand.u32 %v209, 4294901760
      %938 = vmatpush1.msra.mxu0 %v937
      %939 = vmatprep.subr.mxu0 0.0
      %v940 = vand.u32 %v208, 4294901760
      %941 = vmatpush1.msra.mxu0 %v940
      %942 = vmatprep.subr.mxu0 0.0
      %v943 = vand.u32 %v207, 4294901760
      %944 = vmatpush1.msra.mxu0 %v943
      %945 = vmatprep.subr.mxu0 0.0
      %v946 = vand.u32 %v206, 4294901760
      %947 = vmatpush1.msra.mxu0 %v946
      %948 = vmatprep.subr.mxu0 0.0
      %v949 = vand.u32 %v205, 4294901760
      %950 = vmatpush1.msra.mxu0 %v949
      %951 = vmatprep.subr.mxu0 0.0
      %v952 = vand.u32 %v204, 4294901760
      %953 = vmatpush1.msra.mxu0 %v952
      %954 = vmatprep.subr.mxu0 0.0
      %v955 = vand.u32 %v203, 4294901760
      %956 = vmatpush1.msra.mxu0 %v955
      %957 = vmatprep.subr.mxu0 0.0
      %958 = vmatpush2.msra.mxu0 0.0
      %959 = vmatprep.subr.mxu0 0.0
      %960 = vmatpush2.msra.mxu0 0.0
      %961 = vmatprep.subr.mxu0 0.0
      %962 = vmatpush2.msra.mxu0 0.0
      %963 = vmatprep.subr.mxu0 0.0
      %964 = vmatpush2.msra.mxu0 0.0
      %965 = vmatprep.subr.mxu0 0.0
      %966 = vmatpush2.msra.mxu0 0.0
      %967 = vmatprep.subr.mxu0 0.0
      %968 = vmatpush2.msra.mxu0 0.0
      %969 = vmatprep.subr.mxu0 0.0
      %970 = vmatpush2.msra.mxu0 0.0
      %971 = vmatprep.subr.mxu0 0.0
      %972 = vmatpush2.msra.mxu0 0.0
      %973 = vmatprep.subr.mxu0 0.0
      %974 = vmatpush2.msra.mxu0 0.0
      %975 = vmatprep.subr.mxu0 0.0
      %976 = vmatpush2.msra.mxu0 0.0
      %977 = vmatprep.subr.mxu0 0.0
      %978 = vmatpush2.msra.mxu0 0.0
      %979 = vmatprep.subr.mxu0 0.0
      %980 = vmatpush2.msra.mxu0 0.0
      %981 = vmatprep.subr.mxu0 0.0
      %982 = vmatpush2.msra.mxu0 0.0
      %983 = vmatprep.subr.mxu0 0.0
      %984 = vmatpush2.msra.mxu0 0.0
      %985 = vmatprep.subr.mxu0 0.0
      %986 = vmatpush2.msra.mxu0 0.0
      %987 = vmatprep.subr.mxu0 0.0
      %988 = vmatpush2.msra.mxu0 0.0
      %989 = vmatprep.mubr.f32.mxu0 0.0
      %v990 = vand.u32 %v907, 4294901760
      %v991 = vsub.f32 %v907, %v990
      %v992 = vand.u32 %v991, 4294901760
      %v993 = vsub.f32 %v991, %v992
      %v994 = vand.u32 %v993, 4294901760
      %995 = vmatmul.mubr.f32.gmra.mxu0 %v994
      %v996 = vpop.f32.mrf.mxu0
      %v997 = vadd.f32 0.0, %v996
      %v998 = vpop.f32.mrf.mxu0
      %999 = vmatprep.mubr.f32.mxu0 0.0
      %v1000 = vand.u32 %v908, 4294901760
      %v1001 = vsub.f32 %v908, %v1000
      %v1002 = vand.u32 %v1001, 4294901760
      %v1003 = vsub.f32 %v1001, %v1002
      %v1004 = vand.u32 %v1003, 4294901760
      %1005 = vmatmul.mubr.f32.gmra.mxu0 %v1004
      %v1006 = vpop.f32.mrf.mxu0
      %v1007 = vadd.f32 0.0, %v1006
      %v1008 = vpop.f32.mrf.mxu0
      %1009 = vdwg.mxu0
      %1010 = vmatprep.subr.mxu0 0.0
      %v1011 = vand.u32 %v218, 4294901760
      %v1012 = vsub.f32 %v218, %v1011
      %v1013 = vand.u32 %v1012, 4294901760
      %v1014 = vsub.f32 %v1012, %v1013
      %v1015 = vand.u32 %v1014, 4294901760
      %1016 = vmatpush1.msra.mxu0 %v1015
      %1017 = vmatprep.subr.mxu0 0.0
      %v1018 = vand.u32 %v217, 4294901760
      %v1019 = vsub.f32 %v217, %v1018
      %v1020 = vand.u32 %v1019, 4294901760
      %v1021 = vsub.f32 %v1019, %v1020
      %v1022 = vand.u32 %v1021, 4294901760
      %1023 = vmatpush1.msra.mxu0 %v1022
      %1024 = vmatprep.subr.mxu0 0.0
      %v1025 = vand.u32 %v216, 4294901760
      %v1026 = vsub.f32 %v216, %v1025
      %v1027 = vand.u32 %v1026, 4294901760
      %v1028 = vsub.f32 %v1026, %v1027
      %v1029 = vand.u32 %v1028, 4294901760
      %1030 = vmatpush1.msra.mxu0 %v1029
      %1031 = vmatprep.subr.mxu0 0.0
      %v1032 = vand.u32 %v215, 4294901760
      %v1033 = vsub.f32 %v215, %v1032
      %v1034 = vand.u32 %v1033, 4294901760
      %v1035 = vsub.f32 %v1033, %v1034
      %v1036 = vand.u32 %v1035, 4294901760
      %1037 = vmatpush1.msra.mxu0 %v1036
      %1038 = vmatprep.subr.mxu0 0.0
      %v1039 = vand.u32 %v214, 4294901760
      %v1040 = vsub.f32 %v214, %v1039
      %v1041 = vand.u32 %v1040, 4294901760
      %v1042 = vsub.f32 %v1040, %v1041
      %v1043 = vand.u32 %v1042, 4294901760
      %1044 = vmatpush1.msra.mxu0 %v1043
      %1045 = vmatprep.subr.mxu0 0.0
      %v1046 = vand.u32 %v213, 4294901760
      %v1047 = vsub.f32 %v213, %v1046
      %v1048 = vand.u32 %v1047, 4294901760
      %v1049 = vsub.f32 %v1047, %v1048
      %v1050 = vand.u32 %v1049, 4294901760
      %1051 = vmatpush1.msra.mxu0 %v1050
      %1052 = vmatprep.subr.mxu0 0.0
      %v1053 = vand.u32 %v212, 4294901760
      %v1054 = vsub.f32 %v212, %v1053
      %v1055 = vand.u32 %v1054, 4294901760
      %v1056 = vsub.f32 %v1054, %v1055
      %v1057 = vand.u32 %v1056, 4294901760
      %1058 = vmatpush1.msra.mxu0 %v1057
      %1059 = vmatprep.subr.mxu0 0.0
      %v1060 = vand.u32 %v211, 4294901760
      %v1061 = vsub.f32 %v211, %v1060
      %v1062 = vand.u32 %v1061, 4294901760
      %v1063 = vsub.f32 %v1061, %v1062
      %v1064 = vand.u32 %v1063, 4294901760
      %1065 = vmatpush1.msra.mxu0 %v1064
      %1066 = vmatprep.subr.mxu0 0.0
      %v1067 = vand.u32 %v210, 4294901760
      %v1068 = vsub.f32 %v210, %v1067
      %v1069 = vand.u32 %v1068, 4294901760
      %v1070 = vsub.f32 %v1068, %v1069
      %v1071 = vand.u32 %v1070, 4294901760
      %1072 = vmatpush1.msra.mxu0 %v1071
      %1073 = vmatprep.subr.mxu0 0.0
      %v1074 = vand.u32 %v209, 4294901760
      %v1075 = vsub.f32 %v209, %v1074
      %v1076 = vand.u32 %v1075, 4294901760
      %v1077 = vsub.f32 %v1075, %v1076
      %v1078 = vand.u32 %v1077, 4294901760
      %1079 = vmatpush1.msra.mxu0 %v1078
      %1080 = vmatprep.subr.mxu0 0.0
      %v1081 = vand.u32 %v208, 4294901760
      %v1082 = vsub.f32 %v208, %v1081
      %v1083 = vand.u32 %v1082, 4294901760
      %v1084 = vsub.f32 %v1082, %v1083
      %v1085 = vand.u32 %v1084, 4294901760
      %1086 = vmatpush1.msra.mxu0 %v1085
      %1087 = vmatprep.subr.mxu0 0.0
      %v1088 = vand.u32 %v207, 4294901760
      %v1089 = vsub.f32 %v207, %v1088
      %v1090 = vand.u32 %v1089, 4294901760
      %v1091 = vsub.f32 %v1089, %v1090
      %v1092 = vand.u32 %v1091, 4294901760
      %1093 = vmatpush1.msra.mxu0 %v1092
      %1094 = vmatprep.subr.mxu0 0.0
      %v1095 = vand.u32 %v206, 4294901760
      %v1096 = vsub.f32 %v206, %v1095
      %v1097 = vand.u32 %v1096, 4294901760
      %v1098 = vsub.f32 %v1096, %v1097
      %v1099 = vand.u32 %v1098, 4294901760
      %1100 = vmatpush1.msra.mxu0 %v1099
      %1101 = vmatprep.subr.mxu0 0.0
      %v1102 = vand.u32 %v205, 4294901760
      %v1103 = vsub.f32 %v205, %v1102
      %v1104 = vand.u32 %v1103, 4294901760
      %v1105 = vsub.f32 %v1103, %v1104
      %v1106 = vand.u32 %v1105, 4294901760
      %1107 = vmatpush1.msra.mxu0 %v1106
      %1108 = vmatprep.subr.mxu0 0.0
      %v1109 = vand.u32 %v204, 4294901760
      %v1110 = vsub.f32 %v204, %v1109
      %v1111 = vand.u32 %v1110, 4294901760
      %v1112 = vsub.f32 %v1110, %v1111
      %v1113 = vand.u32 %v1112, 4294901760
      %1114 = vmatpush1.msra.mxu0 %v1113
      %1115 = vmatprep.subr.mxu0 0.0
      %v1116 = vand.u32 %v203, 4294901760
      %v1117 = vsub.f32 %v203, %v1116
      %v1118 = vand.u32 %v1117, 4294901760
      %v1119 = vsub.f32 %v1117, %v1118
      %v1120 = vand.u32 %v1119, 4294901760
      %1121 = vmatpush1.msra.mxu0 %v1120
      %1122 = vmatprep.subr.mxu0 0.0
      %1123 = vmatpush2.msra.mxu0 0.0
      %1124 = vmatprep.subr.mxu0 0.0
      %1125 = vmatpush2.msra.mxu0 0.0
      %1126 = vmatprep.subr.mxu0 0.0
      %1127 = vmatpush2.msra.mxu0 0.0
      %1128 = vmatprep.subr.mxu0 0.0
      %1129 = vmatpush2.msra.mxu0 0.0
      %1130 = vmatprep.subr.mxu0 0.0
      %1131 = vmatpush2.msra.mxu0 0.0
      %1132 = vmatprep.subr.mxu0 0.0
      %1133 = vmatpush2.msra.mxu0 0.0
      %1134 = vmatprep.subr.mxu0 0.0
      %1135 = vmatpush2.msra.mxu0 0.0
      %1136 = vmatprep.subr.mxu0 0.0
      %1137 = vmatpush2.msra.mxu0 0.0
      %1138 = vmatprep.subr.mxu0 0.0
      %1139 = vmatpush2.msra.mxu0 0.0
      %1140 = vmatprep.subr.mxu0 0.0
      %1141 = vmatpush2.msra.mxu0 0.0
      %1142 = vmatprep.subr.mxu0 0.0
      %1143 = vmatpush2.msra.mxu0 0.0
      %1144 = vmatprep.subr.mxu0 0.0
      %1145 = vmatpush2.msra.mxu0 0.0
      %1146 = vmatprep.subr.mxu0 0.0
      %1147 = vmatpush2.msra.mxu0 0.0
      %1148 = vmatprep.subr.mxu0 0.0
      %1149 = vmatpush2.msra.mxu0 0.0
      %1150 = vmatprep.subr.mxu0 0.0
      %1151 = vmatpush2.msra.mxu0 0.0
      %1152 = vmatprep.subr.mxu0 0.0
      %1153 = vmatpush2.msra.mxu0 0.0
      %1154 = vmatprep.mubr.f32.mxu0 0.0
      %v1155 = vand.u32 %v907, 4294901760
      %1156 = vmatmul.mubr.f32.gmra.mxu0 %v1155
      %v1157 = vpop.f32.mrf.mxu0
      %v1158 = vadd.f32 %v997, %v1157
      %v1159 = vpop.f32.mrf.mxu0
      %1160 = vmatprep.mubr.f32.mxu0 0.0
      %v1161 = vand.u32 %v908, 4294901760
      %1162 = vmatmul.mubr.f32.gmra.mxu0 %v1161
      %v1163 = vpop.f32.mrf.mxu0
      %v1164 = vadd.f32 %v1007, %v1163
      %v1165 = vpop.f32.mrf.mxu0
      %1166 = vdwg.mxu0
      %1167 = vmatprep.subr.mxu0 0.0
      %v1168 = vand.u32 %v218, 4294901760
      %v1169 = vsub.f32 %v218, %v1168
      %1170 = vmatpush1.msra.mxu0 %v1169
      %1171 = vmatprep.subr.mxu0 0.0
      %v1172 = vand.u32 %v217, 4294901760
      %v1173 = vsub.f32 %v217, %v1172
      %1174 = vmatpush1.msra.mxu0 %v1173
      %1175 = vmatprep.subr.mxu0 0.0
      %v1176 = vand.u32 %v216, 4294901760
      %v1177 = vsub.f32 %v216, %v1176
      %1178 = vmatpush1.msra.mxu0 %v1177
      %1179 = vmatprep.subr.mxu0 0.0
      %v1180 = vand.u32 %v215, 4294901760
      %v1181 = vsub.f32 %v215, %v1180
      %1182 = vmatpush1.msra.mxu0 %v1181
      %1183 = vmatprep.subr.mxu0 0.0
      %v1184 = vand.u32 %v214, 4294901760
      %v1185 = vsub.f32 %v214, %v1184
      %1186 = vmatpush1.msra.mxu0 %v1185
      %1187 = vmatprep.subr.mxu0 0.0
      %v1188 = vand.u32 %v213, 4294901760
      %v1189 = vsub.f32 %v213, %v1188
      %1190 = vmatpush1.msra.mxu0 %v1189
      %1191 = vmatprep.subr.mxu0 0.0
      %v1192 = vand.u32 %v212, 4294901760
      %v1193 = vsub.f32 %v212, %v1192
      %1194 = vmatpush1.msra.mxu0 %v1193
      %1195 = vmatprep.subr.mxu0 0.0
      %v1196 = vand.u32 %v211, 4294901760
      %v1197 = vsub.f32 %v211, %v1196
      %1198 = vmatpush1.msra.mxu0 %v1197
      %1199 = vmatprep.subr.mxu0 0.0
      %v1200 = vand.u32 %v210, 4294901760
      %v1201 = vsub.f32 %v210, %v1200
      %1202 = vmatpush1.msra.mxu0 %v1201
      %1203 = vmatprep.subr.mxu0 0.0
      %v1204 = vand.u32 %v209, 4294901760
      %v1205 = vsub.f32 %v209, %v1204
      %1206 = vmatpush1.msra.mxu0 %v1205
      %1207 = vmatprep.subr.mxu0 0.0
      %v1208 = vand.u32 %v208, 4294901760
      %v1209 = vsub.f32 %v208, %v1208
      %1210 = vmatpush1.msra.mxu0 %v1209
      %1211 = vmatprep.subr.mxu0 0.0
      %v1212 = vand.u32 %v207, 4294901760
      %v1213 = vsub.f32 %v207, %v1212
      %1214 = vmatpush1.msra.mxu0 %v1213
      %1215 = vmatprep.subr.mxu0 0.0
      %v1216 = vand.u32 %v206, 4294901760
      %v1217 = vsub.f32 %v206, %v1216
      %1218 = vmatpush1.msra.mxu0 %v1217
      %1219 = vmatprep.subr.mxu0 0.0
      %v1220 = vand.u32 %v205, 4294901760
      %v1221 = vsub.f32 %v205, %v1220
      %1222 = vmatpush1.msra.mxu0 %v1221
      %1223 = vmatprep.subr.mxu0 0.0
      %v1224 = vand.u32 %v204, 4294901760
      %v1225 = vsub.f32 %v204, %v1224
      %1226 = vmatpush1.msra.mxu0 %v1225
      %1227 = vmatprep.subr.mxu0 0.0
      %v1228 = vand.u32 %v203, 4294901760
      %v1229 = vsub.f32 %v203, %v1228
      %1230 = vmatpush1.msra.mxu0 %v1229
      %1231 = vmatprep.subr.mxu0 0.0
      %1232 = vmatpush2.msra.mxu0 0.0
      %1233 = vmatprep.subr.mxu0 0.0
      %1234 = vmatpush2.msra.mxu0 0.0
      %1235 = vmatprep.subr.mxu0 0.0
      %1236 = vmatpush2.msra.mxu0 0.0
      %1237 = vmatprep.subr.mxu0 0.0
      %1238 = vmatpush2.msra.mxu0 0.0
      %1239 = vmatprep.subr.mxu0 0.0
      %1240 = vmatpush2.msra.mxu0 0.0
      %1241 = vmatprep.subr.mxu0 0.0
      %1242 = vmatpush2.msra.mxu0 0.0
      %1243 = vmatprep.subr.mxu0 0.0
      %1244 = vmatpush2.msra.mxu0 0.0
      %1245 = vmatprep.subr.mxu0 0.0
      %1246 = vmatpush2.msra.mxu0 0.0
      %1247 = vmatprep.subr.mxu0 0.0
      %1248 = vmatpush2.msra.mxu0 0.0
      %1249 = vmatprep.subr.mxu0 0.0
      %1250 = vmatpush2.msra.mxu0 0.0
      %1251 = vmatprep.subr.mxu0 0.0
      %1252 = vmatpush2.msra.mxu0 0.0
      %1253 = vmatprep.subr.mxu0 0.0
      %1254 = vmatpush2.msra.mxu0 0.0
      %1255 = vmatprep.subr.mxu0 0.0
      %1256 = vmatpush2.msra.mxu0 0.0
      %1257 = vmatprep.subr.mxu0 0.0
      %1258 = vmatpush2.msra.mxu0 0.0
      %1259 = vmatprep.subr.mxu0 0.0
      %1260 = vmatpush2.msra.mxu0 0.0
      %1261 = vmatprep.subr.mxu0 0.0
      %1262 = vmatpush2.msra.mxu0 0.0
      %1263 = vmatprep.mubr.f32.mxu0 0.0
      %v1264 = vand.u32 %v907, 4294901760
      %v1265 = vsub.f32 %v907, %v1264
      %1266 = vmatmul.mubr.f32.gmra.mxu0 %v1265
      %v1267 = vpop.f32.mrf.mxu0
      %v1268 = vadd.f32 %v1158, %v1267
      %v1269 = vpop.f32.mrf.mxu0
      %1270 = vmatprep.mubr.f32.mxu0 0.0
      %v1271 = vand.u32 %v908, 4294901760
      %v1272 = vsub.f32 %v908, %v1271
      %1273 = vmatmul.mubr.f32.gmra.mxu0 %v1272
      %v1274 = vpop.f32.mrf.mxu0
      %v1275 = vadd.f32 %v1164, %v1274
      %v1276 = vpop.f32.mrf.mxu0
      %1277 = vdwg.mxu0
      %1278 = vmatprep.subr.mxu0 0.0
      %v1279 = vand.u32 %v218, 4294901760
      %1280 = vmatpush1.msra.mxu0 %v1279
      %1281 = vmatprep.subr.mxu0 0.0
      %v1282 = vand.u32 %v217, 4294901760
      %1283 = vmatpush1.msra.mxu0 %v1282
      %1284 = vmatprep.subr.mxu0 0.0
      %v1285 = vand.u32 %v216, 4294901760
      %1286 = vmatpush1.msra.mxu0 %v1285
      %1287 = vmatprep.subr.mxu0 0.0
      %v1288 = vand.u32 %v215, 4294901760
      %1289 = vmatpush1.msra.mxu0 %v1288
      %1290 = vmatprep.subr.mxu0 0.0
      %v1291 = vand.u32 %v214, 4294901760
      %1292 = vmatpush1.msra.mxu0 %v1291
      %1293 = vmatprep.subr.mxu0 0.0
      %v1294 = vand.u32 %v213, 4294901760
      %1295 = vmatpush1.msra.mxu0 %v1294
      %1296 = vmatprep.subr.mxu0 0.0
      %v1297 = vand.u32 %v212, 4294901760
      %1298 = vmatpush1.msra.mxu0 %v1297
      %1299 = vmatprep.subr.mxu0 0.0
      %v1300 = vand.u32 %v211, 4294901760
      %1301 = vmatpush1.msra.mxu0 %v1300
      %1302 = vmatprep.subr.mxu0 0.0
      %v1303 = vand.u32 %v210, 4294901760
      %1304 = vmatpush1.msra.mxu0 %v1303
      %1305 = vmatprep.subr.mxu0 0.0
      %v1306 = vand.u32 %v209, 4294901760
      %1307 = vmatpush1.msra.mxu0 %v1306
      %1308 = vmatprep.subr.mxu0 0.0
      %v1309 = vand.u32 %v208, 4294901760
      %1310 = vmatpush1.msra.mxu0 %v1309
      %1311 = vmatprep.subr.mxu0 0.0
      %v1312 = vand.u32 %v207, 4294901760
      %1313 = vmatpush1.msra.mxu0 %v1312
      %1314 = vmatprep.subr.mxu0 0.0
      %v1315 = vand.u32 %v206, 4294901760
      %1316 = vmatpush1.msra.mxu0 %v1315
      %1317 = vmatprep.subr.mxu0 0.0
      %v1318 = vand.u32 %v205, 4294901760
      %1319 = vmatpush1.msra.mxu0 %v1318
      %1320 = vmatprep.subr.mxu0 0.0
      %v1321 = vand.u32 %v204, 4294901760
      %1322 = vmatpush1.msra.mxu0 %v1321
      %1323 = vmatprep.subr.mxu0 0.0
      %v1324 = vand.u32 %v203, 4294901760
      %1325 = vmatpush1.msra.mxu0 %v1324
      %1326 = vmatprep.subr.mxu0 0.0
      %1327 = vmatpush2.msra.mxu0 0.0
      %1328 = vmatprep.subr.mxu0 0.0
      %1329 = vmatpush2.msra.mxu0 0.0
      %1330 = vmatprep.subr.mxu0 0.0
      %1331 = vmatpush2.msra.mxu0 0.0
      %1332 = vmatprep.subr.mxu0 0.0
      %1333 = vmatpush2.msra.mxu0 0.0
      %1334 = vmatprep.subr.mxu0 0.0
      %1335 = vmatpush2.msra.mxu0 0.0
      %1336 = vmatprep.subr.mxu0 0.0
      %1337 = vmatpush2.msra.mxu0 0.0
      %1338 = vmatprep.subr.mxu0 0.0
      %1339 = vmatpush2.msra.mxu0 0.0
      %1340 = vmatprep.subr.mxu0 0.0
      %1341 = vmatpush2.msra.mxu0 0.0
      %1342 = vmatprep.subr.mxu0 0.0
      %1343 = vmatpush2.msra.mxu0 0.0
      %1344 = vmatprep.subr.mxu0 0.0
      %1345 = vmatpush2.msra.mxu0 0.0
      %1346 = vmatprep.subr.mxu0 0.0
      %1347 = vmatpush2.msra.mxu0 0.0
      %1348 = vmatprep.subr.mxu0 0.0
      %1349 = vmatpush2.msra.mxu0 0.0
      %1350 = vmatprep.subr.mxu0 0.0
      %1351 = vmatpush2.msra.mxu0 0.0
      %1352 = vmatprep.subr.mxu0 0.0
      %1353 = vmatpush2.msra.mxu0 0.0
      %1354 = vmatprep.subr.mxu0 0.0
      %1355 = vmatpush2.msra.mxu0 0.0
      %1356 = vmatprep.subr.mxu0 0.0
      %1357 = vmatpush2.msra.mxu0 0.0
      %1358 = vmatprep.mubr.f32.mxu0 0.0
      %v1359 = vand.u32 %v907, 4294901760
      %v1360 = vsub.f32 %v907, %v1359
      %v1361 = vand.u32 %v1360, 4294901760
      %1362 = vmatmul.mubr.f32.gmra.mxu0 %v1361
      %v1363 = vpop.f32.mrf.mxu0
      %v1364 = vadd.f32 %v1268, %v1363
      %v1365 = vpop.f32.mrf.mxu0
      %1366 = vmatprep.mubr.f32.mxu0 0.0
      %v1367 = vand.u32 %v908, 4294901760
      %v1368 = vsub.f32 %v908, %v1367
      %v1369 = vand.u32 %v1368, 4294901760
      %1370 = vmatmul.mubr.f32.gmra.mxu0 %v1369
      %v1371 = vpop.f32.mrf.mxu0
      %v1372 = vadd.f32 %v1275, %v1371
      %v1373 = vpop.f32.mrf.mxu0
      %1374 = vdwg.mxu0
      %1375 = vmatprep.subr.mxu0 0.0
      %v1376 = vand.u32 %v218, 4294901760
      %v1377 = vsub.f32 %v218, %v1376
      %v1378 = vand.u32 %v1377, 4294901760
      %1379 = vmatpush1.msra.mxu0 %v1378
      %1380 = vmatprep.subr.mxu0 0.0
      %v1381 = vand.u32 %v217, 4294901760
      %v1382 = vsub.f32 %v217, %v1381
      %v1383 = vand.u32 %v1382, 4294901760
      %1384 = vmatpush1.msra.mxu0 %v1383
      %1385 = vmatprep.subr.mxu0 0.0
      %v1386 = vand.u32 %v216, 4294901760
      %v1387 = vsub.f32 %v216, %v1386
      %v1388 = vand.u32 %v1387, 4294901760
      %1389 = vmatpush1.msra.mxu0 %v1388
      %1390 = vmatprep.subr.mxu0 0.0
      %v1391 = vand.u32 %v215, 4294901760
      %v1392 = vsub.f32 %v215, %v1391
      %v1393 = vand.u32 %v1392, 4294901760
      %1394 = vmatpush1.msra.mxu0 %v1393
      %1395 = vmatprep.subr.mxu0 0.0
      %v1396 = vand.u32 %v214, 4294901760
      %v1397 = vsub.f32 %v214, %v1396
      %v1398 = vand.u32 %v1397, 4294901760
      %1399 = vmatpush1.msra.mxu0 %v1398
      %1400 = vmatprep.subr.mxu0 0.0
      %v1401 = vand.u32 %v213, 4294901760
      %v1402 = vsub.f32 %v213, %v1401
      %v1403 = vand.u32 %v1402, 4294901760
      %1404 = vmatpush1.msra.mxu0 %v1403
      %1405 = vmatprep.subr.mxu0 0.0
      %v1406 = vand.u32 %v212, 4294901760
      %v1407 = vsub.f32 %v212, %v1406
      %v1408 = vand.u32 %v1407, 4294901760
      %1409 = vmatpush1.msra.mxu0 %v1408
      %1410 = vmatprep.subr.mxu0 0.0
      %v1411 = vand.u32 %v211, 4294901760
      %v1412 = vsub.f32 %v211, %v1411
      %v1413 = vand.u32 %v1412, 4294901760
      %1414 = vmatpush1.msra.mxu0 %v1413
      %1415 = vmatprep.subr.mxu0 0.0
      %v1416 = vand.u32 %v210, 4294901760
      %v1417 = vsub.f32 %v210, %v1416
      %v1418 = vand.u32 %v1417, 4294901760
      %1419 = vmatpush1.msra.mxu0 %v1418
      %1420 = vmatprep.subr.mxu0 0.0
      %v1421 = vand.u32 %v209, 4294901760
      %v1422 = vsub.f32 %v209, %v1421
      %v1423 = vand.u32 %v1422, 4294901760
      %1424 = vmatpush1.msra.mxu0 %v1423
      %1425 = vmatprep.subr.mxu0 0.0
      %v1426 = vand.u32 %v208, 4294901760
      %v1427 = vsub.f32 %v208, %v1426
      %v1428 = vand.u32 %v1427, 4294901760
      %1429 = vmatpush1.msra.mxu0 %v1428
      %1430 = vmatprep.subr.mxu0 0.0
      %v1431 = vand.u32 %v207, 4294901760
      %v1432 = vsub.f32 %v207, %v1431
      %v1433 = vand.u32 %v1432, 4294901760
      %1434 = vmatpush1.msra.mxu0 %v1433
      %1435 = vmatprep.subr.mxu0 0.0
      %v1436 = vand.u32 %v206, 4294901760
      %v1437 = vsub.f32 %v206, %v1436
      %v1438 = vand.u32 %v1437, 4294901760
      %1439 = vmatpush1.msra.mxu0 %v1438
      %1440 = vmatprep.subr.mxu0 0.0
      %v1441 = vand.u32 %v205, 4294901760
      %v1442 = vsub.f32 %v205, %v1441
      %v1443 = vand.u32 %v1442, 4294901760
      %1444 = vmatpush1.msra.mxu0 %v1443
      %1445 = vmatprep.subr.mxu0 0.0
      %v1446 = vand.u32 %v204, 4294901760
      %v1447 = vsub.f32 %v204, %v1446
      %v1448 = vand.u32 %v1447, 4294901760
      %1449 = vmatpush1.msra.mxu0 %v1448
      %1450 = vmatprep.subr.mxu0 0.0
      %v1451 = vand.u32 %v203, 4294901760
      %v1452 = vsub.f32 %v203, %v1451
      %v1453 = vand.u32 %v1452, 4294901760
      %1454 = vmatpush1.msra.mxu0 %v1453
      %1455 = vmatprep.subr.mxu0 0.0
      %1456 = vmatpush2.msra.mxu0 0.0
      %1457 = vmatprep.subr.mxu0 0.0
      %1458 = vmatpush2.msra.mxu0 0.0
      %1459 = vmatprep.subr.mxu0 0.0
      %1460 = vmatpush2.msra.mxu0 0.0
      %1461 = vmatprep.subr.mxu0 0.0
      %1462 = vmatpush2.msra.mxu0 0.0
      %1463 = vmatprep.subr.mxu0 0.0
      %1464 = vmatpush2.msra.mxu0 0.0
      %1465 = vmatprep.subr.mxu0 0.0
      %1466 = vmatpush2.msra.mxu0 0.0
      %1467 = vmatprep.subr.mxu0 0.0
      %1468 = vmatpush2.msra.mxu0 0.0
      %1469 = vmatprep.subr.mxu0 0.0
      %1470 = vmatpush2.msra.mxu0 0.0
      %1471 = vmatprep.subr.mxu0 0.0
      %1472 = vmatpush2.msra.mxu0 0.0
      %1473 = vmatprep.subr.mxu0 0.0
      %1474 = vmatpush2.msra.mxu0 0.0
      %1475 = vmatprep.subr.mxu0 0.0
      %1476 = vmatpush2.msra.mxu0 0.0
      %1477 = vmatprep.subr.mxu0 0.0
      %1478 = vmatpush2.msra.mxu0 0.0
      %1479 = vmatprep.subr.mxu0 0.0
      %1480 = vmatpush2.msra.mxu0 0.0
      %1481 = vmatprep.subr.mxu0 0.0
      %1482 = vmatpush2.msra.mxu0 0.0
      %1483 = vmatprep.subr.mxu0 0.0
      %1484 = vmatpush2.msra.mxu0 0.0
      %1485 = vmatprep.subr.mxu0 0.0
      %1486 = vmatpush2.msra.mxu0 0.0
      %1487 = vmatprep.mubr.f32.mxu0 0.0
      %v1488 = vand.u32 %v907, 4294901760
      %1489 = vmatmul.mubr.f32.gmra.mxu0 %v1488
      %v1490 = vpop.f32.mrf.mxu0
      %v1491 = vadd.f32 %v1364, %v1490
      %v1492 = vpop.f32.mrf.mxu0
      %1493 = vmatprep.mubr.f32.mxu0 0.0
      %v1494 = vand.u32 %v908, 4294901760
      %1495 = vmatmul.mubr.f32.gmra.mxu0 %v1494
      %v1496 = vpop.f32.mrf.mxu0
      %v1497 = vadd.f32 %v1372, %v1496
      %v1498 = vpop.f32.mrf.mxu0
      %1499 = vdwg.mxu0
      %1500 = vmatprep.subr.mxu0 0.0
      %v1501 = vand.u32 %v218, 4294901760
      %1502 = vmatpush1.msra.mxu0 %v1501
      %1503 = vmatprep.subr.mxu0 0.0
      %v1504 = vand.u32 %v217, 4294901760
      %1505 = vmatpush1.msra.mxu0 %v1504
      %1506 = vmatprep.subr.mxu0 0.0
      %v1507 = vand.u32 %v216, 4294901760
      %1508 = vmatpush1.msra.mxu0 %v1507
      %1509 = vmatprep.subr.mxu0 0.0
      %v1510 = vand.u32 %v215, 4294901760
      %1511 = vmatpush1.msra.mxu0 %v1510
      %1512 = vmatprep.subr.mxu0 0.0
      %v1513 = vand.u32 %v214, 4294901760
      %1514 = vmatpush1.msra.mxu0 %v1513
      %1515 = vmatprep.subr.mxu0 0.0
      %v1516 = vand.u32 %v213, 4294901760
      %1517 = vmatpush1.msra.mxu0 %v1516
      %1518 = vmatprep.subr.mxu0 0.0
      %v1519 = vand.u32 %v212, 4294901760
      %1520 = vmatpush1.msra.mxu0 %v1519
      %1521 = vmatprep.subr.mxu0 0.0
      %v1522 = vand.u32 %v211, 4294901760
      %1523 = vmatpush1.msra.mxu0 %v1522
      %1524 = vmatprep.subr.mxu0 0.0
      %v1525 = vand.u32 %v210, 4294901760
      %1526 = vmatpush1.msra.mxu0 %v1525
      %1527 = vmatprep.subr.mxu0 0.0
      %v1528 = vand.u32 %v209, 4294901760
      %1529 = vmatpush1.msra.mxu0 %v1528
      %1530 = vmatprep.subr.mxu0 0.0
      %v1531 = vand.u32 %v208, 4294901760
      %1532 = vmatpush1.msra.mxu0 %v1531
      %1533 = vmatprep.subr.mxu0 0.0
      %v1534 = vand.u32 %v207, 4294901760
      %1535 = vmatpush1.msra.mxu0 %v1534
      %1536 = vmatprep.subr.mxu0 0.0
      %v1537 = vand.u32 %v206, 4294901760
      %1538 = vmatpush1.msra.mxu0 %v1537
      %1539 = vmatprep.subr.mxu0 0.0
      %v1540 = vand.u32 %v205, 4294901760
      %1541 = vmatpush1.msra.mxu0 %v1540
      %1542 = vmatprep.subr.mxu0 0.0
      %v1543 = vand.u32 %v204, 4294901760
      %1544 = vmatpush1.msra.mxu0 %v1543
      %1545 = vmatprep.subr.mxu0 0.0
      %v1546 = vand.u32 %v203, 4294901760
      %1547 = vmatpush1.msra.mxu0 %v1546
      %1548 = vmatprep.subr.mxu0 0.0
      %1549 = vmatpush2.msra.mxu0 0.0
      %1550 = vmatprep.subr.mxu0 0.0
      %1551 = vmatpush2.msra.mxu0 0.0
      %1552 = vmatprep.subr.mxu0 0.0
      %1553 = vmatpush2.msra.mxu0 0.0
      %1554 = vmatprep.subr.mxu0 0.0
      %1555 = vmatpush2.msra.mxu0 0.0
      %1556 = vmatprep.subr.mxu0 0.0
      %1557 = vmatpush2.msra.mxu0 0.0
      %1558 = vmatprep.subr.mxu0 0.0
      %1559 = vmatpush2.msra.mxu0 0.0
      %1560 = vmatprep.subr.mxu0 0.0
      %1561 = vmatpush2.msra.mxu0 0.0
      %1562 = vmatprep.subr.mxu0 0.0
      %1563 = vmatpush2.msra.mxu0 0.0
      %1564 = vmatprep.subr.mxu0 0.0
      %1565 = vmatpush2.msra.mxu0 0.0
      %1566 = vmatprep.subr.mxu0 0.0
      %1567 = vmatpush2.msra.mxu0 0.0
      %1568 = vmatprep.subr.mxu0 0.0
      %1569 = vmatpush2.msra.mxu0 0.0
      %1570 = vmatprep.subr.mxu0 0.0
      %1571 = vmatpush2.msra.mxu0 0.0
      %1572 = vmatprep.subr.mxu0 0.0
      %1573 = vmatpush2.msra.mxu0 0.0
      %1574 = vmatprep.subr.mxu0 0.0
      %1575 = vmatpush2.msra.mxu0 0.0
      %1576 = vmatprep.subr.mxu0 0.0
      %1577 = vmatpush2.msra.mxu0 0.0
      %1578 = vmatprep.subr.mxu0 0.0
      %1579 = vmatpush2.msra.mxu0 0.0
      %1580 = vmatprep.mubr.f32.mxu0 0.0
      %v1581 = vand.u32 %v907, 4294901760
      %1582 = vmatmul.mubr.f32.gmra.mxu0 %v1581
      %v1583 = vpop.f32.mrf.mxu0
      %v1584 = vadd.f32 %v1491, %v1583
      %v1585 = vpop.f32.mrf.mxu0
      %1586 = vmatprep.mubr.f32.mxu0 0.0
      %v1587 = vand.u32 %v908, 4294901760
      %1588 = vmatmul.mubr.f32.gmra.mxu0 %v1587
      %v1589 = vpop.f32.mrf.mxu0
      %v1590 = vadd.f32 %v1497, %v1589
      %v1591 = vpop.f32.mrf.mxu0
      %1592 = vdwg.mxu0
      %v1593 = vrcp.pop 63.0
      %v1594 = vmul.f32 %v1584, %v1593
      %v1595 = vmul.f32 %v1590, %v1593
      %v1596 = vrsqrt.pop %v1594
      %v1597 = vmul.f32 %v1594, %v1596
      %vm1598 = vcmp.eq.f32.partialorder %v1594, inf
      %v1599 = vsel %vm1598, %v1594, %v1597
      %vm1600 = vcmp.eq.f32.partialorder %v1594, 0.0
      %v1601 = vand.u32 %v1594, 2147483648
      %v1602 = vsel %vm1600, %v1601, %v1599
      %v1603 = vrsqrt.pop %v1595
      %v1604 = vmul.f32 %v1595, %v1603
      %vm1605 = vcmp.eq.f32.partialorder %v1595, inf
      %v1606 = vsel %vm1605, %v1595, %v1604
      %vm1607 = vcmp.eq.f32.partialorder %v1595, 0.0
      %v1608 = vand.u32 %v1595, 2147483648
      %v1609 = vsel %vm1607, %v1608, %v1606
      %v1610 = vadd.f32 %v1602, 1e-06
      %v1611 = vadd.f32 %v1609, 1e-06
      %v1612 = vrcp.pop %v1610
      %v1613 = vrcp.pop %v1611
      %v1614 = vld [vmem:[%s1] sm:$0x1]
      %v1615 = vmul.f32 %v905, %v1612
      %v1616 = vmul.f32 %v906, %v1613
      %v1618 = vlaneseq
      %v1619 = vshrl.u32 %v1618, 7
      %v1620 = vsub.s32 0, %v1619
      %v1621 = vrot.slane %v1614, %v1620
      %v1623 = vmul.f32 %v1621, %v1615
      %v1624 = vmul.f32 %v1621, %v1616
      %v1625 = vld [vmem:[%s2] sm:$0x1]
      %v1627 = vlaneseq
      %v1628 = vshrl.u32 %v1627, 7
      %v1629 = vsub.s32 0, %v1628
      %v1630 = vrot.slane %v1625, %v1629
      %v1632 = vadd.f32 %v1623, %v1630
      %v1633 = vadd.f32 %v1624, %v1630
      %1634 = vst [vmem:[%s199] sm:$0xff] %v1632
      %1635 = vst [vmem:[%s199 + $0x8] sm:$0xff] %v1633
      %s1636 = smul.u32 2, %s15
      %p1637 = scmp.lt.s32.totalorder %s1636, 15
      %s1638 = scalar_select %p1637, %s1636, 15
      %s1639 = smul.addr %s1638, 8
      %s1640 = scalar_lea.vmem %s4, %s1639
      // Predicated region
      $region37: #{pallas_layer_norm.1} parent=35 // pred_check
        %p1641 = pneg %p122
      $region38: #{pallas_layer_norm.1} parent=35 // pred_check_branch
        %1643 = sbr.rel (%p1641) target = $region40
      $region39: #{pallas_layer_norm.1} parent=35 // pred_region
        %s1644 = smul.u32 2, %s15
      $region40: #{pallas_layer_norm.1} parent=35 // pred_fallthru
        _
    $region36: #{pallas_layer_norm.1} parent=5 // pred_fallthru
      _
    %p1645 = scmp.le.s32.totalorder 2, %s10
    // Predicated region
    $region41: #{pallas_layer_norm.1} parent=5 // pred_check
      %p1646 = pneg %p1645
    $region42: #{pallas_layer_norm.1} parent=5 // pred_check_branch
      %1648 = sbr.rel (%p1646) target = $region44
    $region43: #{pallas_layer_norm.1} parent=5 // pred_region
      %s1649 = ssub.s32 %s10, 2
      // Predicated region
      $region45: #{pallas_layer_norm.1} parent=43 // pred_check
        %p1650 = pneg %p128
      $region46: #{pallas_layer_norm.1} parent=43 // pred_check_branch
        %1652 = sbr.rel (%p1650) target = $region48
      $region47: #{pallas_layer_norm.1} parent=43 // pred_region
        %s1653 = smul.u32 2, %s16
        %p1654 = scmp.lt.s32.totalorder %s1653, 15
        %s1655 = scalar_select %p1654, %s1653, 15
        %s1656 = smul.addr %s1655, 8
        %s1657 = scalar_lea.vmem %s4, %s1656
      $region48: #{pallas_layer_norm.1} parent=43 // pred_fallthru
        _
    $region44: #{pallas_layer_norm.1} parent=5 // pred_fallthru
      _
  $region6: #{pallas_layer_norm.1} parent=0 // loop_footer
    %s14 = sadd.s32 1, %s10
  $region7: #{pallas_layer_norm.1} parent=0 // loop_footer_branch
    %9 = sbr.rel target = $region3
  $region8: #{pallas_layer_norm.1} parent=0 // loop_exit
    _

</llo_original>
